<compile_context>
chip_gen: v7x
topology: tpu7x:2x2x1
jax: 0.10.0
libtpu: 0.0.40
codegen_flags: <defaults>
</compile_context>

<pallas_src>
import jax
import jax.numpy as jnp
from jax.experimental import pallas as pl
from jax.experimental.pallas import tpu as pltpu


# ----------------------------- static network dims -------------------------
KH = KW = 3
C_IN = 2
C1 = 32                      # conv1 out channels
C2 = 64                      # conv2 out channels
H_IN = W_IN = 10
OH1 = H_IN - KH + 1          # 8   conv1 output spatial
OH2 = OH1 - KH + 1           # 6   conv2 output spatial
HP = OH2 // 2                # 3   pooled spatial
N_SPATIAL = HP * HP          # 9   pooled positions
N_TAPS = KH * KW             # 9   conv2 kernel taps
PATCH1 = C_IN * KH * KW      # 18  conv1 im2col width
NCOLS = N_TAPS * PATCH1      # 162 tap-minor conv1 patch width
C1TM = N_TAPS * C1           # 288 tap-minor conv1 output width (= conv2 K)
ROWS_PER_B = OH2 * OH2       # 36  conv2 output rows per sample (= 4*9)
FC1_IN = C2 * N_SPATIAL      # 576
FC1_OUT = 512
FC2_OUT = 100
FC2_PAD = 128                # lane-dense padded output width
TB = 8                       # batch tile (multiple of 8 -> all slices aligned)


# ----------------------------- fused Pallas kernel -------------------------
def _fused_net_kernel(patches_ref, w1_ref, b1_ref, w2_ref, b2_ref,
                      wfc1_ref, bfc1_ref, wfc2_ref, bfc2_ref, out_ref):
    """One batch tile of the whole Net forward; everything stays in VMEM.

    patches_ref : (36*TB, 162) bf16  tap-minor conv1 patches; rows ordered
                                     (pool corner v, pooled spatial s, sample b).
    w1_ref      : (162, 288)   bf16  block-diagonal conv1 weight (9 x (18,32)).
    w2_ref      : (288, 64)    bf16  conv2 weight, rows ordered (tap, c1).
    wfc1_ref    : (576, 512)   bf16  fc1 weight, rows ordered (s, c2).
    wfc2_ref    : (512, 128)   bf16  fc2 weight, padded 100 -> 128 lanes.
    out_ref     : (TB, 128)    f32   lane-dense padded output block.
    """
    f32 = jnp.float32
    bf16 = jnp.bfloat16
    slab = N_SPATIAL * TB            # rows per 2x2-pool corner slab (72)

    # conv1: single K=162 GEMM against the block-diagonal tap-minor weight;
    # each output row is directly the conv2 im2col row (lanes = (tap, c1)).
    h1 = jnp.dot(patches_ref[...], w1_ref[...], preferred_element_type=f32)
    h1 = jnp.maximum(h1 + b1_ref[...], 0.0).astype(bf16)           # (36*TB, 288)

    # conv2: single K=288 GEMM (near-full MXU row fill, one issue sequence).
    h2 = jnp.dot(h1, w2_ref[...], preferred_element_type=f32)
    h2 = jnp.maximum(h2 + b2_ref[...], 0.0)                        # (36*TB, 64)

    # 2x2 max pool: rows are ordered (corner, s, b) -> pure VPU max over the
    # 4 contiguous, sublane-aligned corner slabs (no selection GEMMs).
    pooled = jnp.maximum(jnp.maximum(h2[0 * slab:1 * slab], h2[1 * slab:2 * slab]),
                         jnp.maximum(h2[2 * slab:3 * slab], h2[3 * slab:4 * slab]))
    # pooled: (9*TB, 64) f32, rows ordered (s, b).

    # fc1 input: one (TB, 576) slab with lanes ordered (s, c2); single cast.
    fc1_in = jnp.concatenate(
        [pooled[s * TB:(s + 1) * TB, :] for s in range(N_SPATIAL)],
        axis=1).astype(bf16)                                        # (TB, 576)

    # fc1: single K=576 GEMM (+bias, ReLU).
    h3 = jnp.dot(fc1_in, wfc1_ref[...], preferred_element_type=f32)
    h3 = jnp.maximum(h3 + bfc1_ref[...], 0.0).astype(bf16)          # (TB, 512)

    # fc2 (+bias): single unmasked lane-dense (TB, 128) store.
    out_ref[...] = (jnp.dot(h3, wfc2_ref[...], preferred_element_type=f32)
                    + bfc2_ref[...])


# ----------------------------- wrapper-side glue ---------------------------
def _build_patches(x, bp):
    """x: (B, 2, 10, 10) -> (36*bp, 162) bf16 tap-minor conv1 patches.

    Row order: (batch-tile, pool corner v=u*2+w, pooled spatial s=pi*3+pj,
    in-tile sample b).  Column order: (tap t=di*3+dj, ci, ki, kj), value
    x[b, ci, 2*pi+u+di+ki, 2*pj+w+dj+kj].  Input-only layout plumbing.
    """
    B = x.shape[0]
    if bp != B:
        x = jnp.concatenate(
            [x, jnp.zeros((bp - B,) + x.shape[1:], x.dtype)], axis=0)
    cols = []
    for di in range(KH):
        for dj in range(KW):
            for ci in range(C_IN):
                for ki in range(KH):
                    for kj in range(KW):
                        cols.append(
                            x[:, ci, di + ki:di + ki + OH2, dj + kj:dj + kj + OH2])
    p = jnp.stack(cols, axis=-1)                       # (bp, 6, 6, 162)
    p = p.reshape(bp, HP, 2, HP, 2, NCOLS)             # (b, pi, u, pj, w, col)
    nt = bp // TB
    p = p.reshape(nt, TB, HP, 2, HP, 2, NCOLS)         # (tile, b, pi, u, pj, w, col)
    p = jnp.transpose(p, (0, 3, 5, 2, 4, 1, 6))        # (tile, u, w, pi, pj, b, col)
    return p.reshape(nt * ROWS_PER_B * TB, NCOLS).astype(jnp.bfloat16)


def prepare_params(params):
    """One-time, batch-independent weight repacking / casting."""
    bf16, f32 = jnp.bfloat16, jnp.float32

    # conv1: (18, 32) with rows ordered (ci, ki, kj); replicated block-diagonal
    # so the tap-minor patch GEMM emits conv2 im2col rows directly.
    w1 = params["conv1_w"].reshape(C1, PATCH1).T.astype(f32)          # (18, 32)
    w1bd = jnp.kron(jnp.eye(N_TAPS, dtype=f32), w1).astype(bf16)      # (162, 288)
    b1 = jnp.tile(params["conv1_b"].astype(f32), N_TAPS).reshape(1, C1TM)

    # conv2: rows ordered (tap t, c1) to match h1's lane order.
    w2 = jnp.transpose(params["conv2_w"].reshape(C2, C1, N_TAPS),
                       (2, 1, 0)).reshape(C1TM, C2).astype(bf16)       # (288, 64)
    b2 = params["conv2_b"].reshape(1, C2).astype(f32)

    # fc1: rows ordered (s, c2); PyTorch flatten is (c2, s) => w[o, c*9+s].
    wfc1 = jnp.transpose(params["fc1_w"].reshape(FC1_OUT, C2, N_SPATIAL),
                         (2, 1, 0)).reshape(FC1_IN, FC1_OUT).astype(bf16)
    bfc1 = params["fc1_b"].reshape(1, FC1_OUT).astype(f32)

    # fc2 transposed + zero-padded to 128 lanes (unmasked output store).
    wfc2 = jnp.zeros((FC1_OUT, FC2_PAD), f32).at[:, :FC2_OUT].set(
        params["fc2_w"].T).astype(bf16)                                # (512, 128)
    bfc2 = jnp.zeros((1, FC2_PAD), f32).at[:, :FC2_OUT].set(params["fc2_b"])

    return dict(w1bd=w1bd, b1=b1, w2=w2, b2=b2,
                wfc1=wfc1, bfc1=bfc1, wfc2=wfc2, bfc2=bfc2)


def _weight_spec(shape):
    """Full-array weight block, constant across the grid; single-buffered."""
    idx = lambda i: (0,) * len(shape)
    try:
        return pl.BlockSpec(shape, idx, pipeline_mode=pl.Buffered(1))
    except TypeError:  # older BlockSpec without pipeline_mode kwarg
        return pl.BlockSpec(shape, idx)


def net_forward(prepared, x):
    """Fused Pallas forward; matches PyTorch Net.forward semantics."""
    B = x.shape[0]
    bp = ((B + TB - 1) // TB) * TB
    nt = bp // TB

    patches = _build_patches(x, bp)                     # (36*bp, 162) bf16

    flops = 2 * bp * (ROWS_PER_B * (NCOLS * C1TM + C1TM * C2)
                      + FC1_IN * FC1_OUT + FC1_OUT * FC2_PAD)
    weight_bytes = 2 * (NCOLS * C1TM + C1TM * C2 + FC1_IN * FC1_OUT
                        + FC1_OUT * FC2_PAD) \
        + 4 * (C1TM + C2 + FC1_OUT + FC2_PAD)
    bytes_accessed = patches.size * 2 + weight_bytes + bp * FC2_PAD * 4

    out_pad = pl.pallas_call(
        _fused_net_kernel,
        out_shape=jax.ShapeDtypeStruct((bp, FC2_PAD), jnp.float32),
        grid=(nt,),
        in_specs=[
            pl.BlockSpec((ROWS_PER_B * TB, NCOLS), lambda i: (i, 0)),   # patches
            _weight_spec((NCOLS, C1TM)),                                # w1 blkdiag
            _weight_spec((1, C1TM)),                                    # b1 tiled
            _weight_spec((C1TM, C2)),                                   # w2
            _weight_spec((1, C2)),                                      # b2
            _weight_spec((FC1_IN, FC1_OUT)),                            # wfc1
            _weight_spec((1, FC1_OUT)),                                 # bfc1
            _weight_spec((FC1_OUT, FC2_PAD)),                           # wfc2
            _weight_spec((1, FC2_PAD)),                                 # bfc2
        ],
        out_specs=pl.BlockSpec((TB, FC2_PAD), lambda i: (i, 0)),
        compiler_params=pltpu.CompilerParams(
            dimension_semantics=("parallel",),
            vmem_limit_bytes=32 * 1024 * 1024),
        cost_estimate=pl.CostEstimate(flops=flops, transcendentals=0,
                                      bytes_accessed=bytes_accessed),
    )(patches, prepared["w1bd"], prepared["b1"], prepared["w2"], prepared["b2"],
      prepared["wfc1"], prepared["bfc1"], prepared["wfc2"], prepared["bfc2"])

    return out_pad[:B, :FC2_OUT]


# ----------------------------- pure-JAX reference --------------------------
def net_forward_ref(params, x):
    dn = ("NCHW", "OIHW", "NCHW")
    y = jax.lax.conv_general_dilated(x, params["conv1_w"], (1, 1), "VALID",
                                     dimension_numbers=dn)
    y = jax.nn.relu(y + params["conv1_b"][None, :, None, None])
    y = jax.lax.conv_general_dilated(y, params["conv2_w"], (1, 1), "VALID",
                                     dimension_numbers=dn)
    y = jax.nn.relu(y + params["conv2_b"][None, :, None, None])
    y = jax.lax.reduce_window(y, -jnp.inf, jax.lax.max,
                              (1, 1, 2, 2), (1, 1, 2, 2), "VALID")
    y = y.reshape(y.shape[0], -1)
    y = jax.nn.relu(y @ params["fc1_w"].T + params["fc1_b"])
    return y @ params["fc2_w"].T + params["fc2_b"]


# ----------------------------- deterministic init --------------------------
def init_params(key):
    def u(k, shape, fan_in):
        bound = 1.0 / (fan_in ** 0.5)
        return jax.random.uniform(k, shape, jnp.float32, -bound, bound)

    ks = jax.random.split(key, 8)
    return {
        "conv1_w": u(ks[0], (32, 2, 3, 3), 2 * 3 * 3),
        "conv1_b": u(ks[1], (32,), 2 * 3 * 3),
        "conv2_w": u(ks[2], (64, 32, 3, 3), 32 * 3 * 3),
        "conv2_b": u(ks[3], (64,), 32 * 3 * 3),
        "fc1_w":   u(ks[4], (512, 576), 576),
        "fc1_b":   u(ks[5], (512,), 576),
        "fc2_w":   u(ks[6], (100, 512), 512),
        "fc2_b":   u(ks[7], (100,), 512),
    }


if __name__ == "__main__":
    key = jax.random.PRNGKey(0)
    k_params, k_x = jax.random.split(key)
    params = init_params(k_params)

    # Input implied by fc1 (576 = 64*3*3): 10x10 spatial, 2 channels, batch=2.
    x = jax.random.normal(k_x, (2, C_IN, H_IN, W_IN), dtype=jnp.float32)

    prepared = prepare_params(params)          # batch-independent repack

    out = jax.jit(net_forward)(prepared, x)
    out = jax.block_until_ready(out)
    assert out.shape == (2, FC2_OUT), out.shape

    ref = jax.jit(net_forward_ref)(params, x)
    ref = jax.block_until_ready(ref)

    # bf16 MXU operands with f32 accumulation -> slightly looser tolerance.
    if not jnp.allclose(out, ref, rtol=2e-2, atol=2e-2):
        max_err = float(jnp.max(jnp.abs(out - ref)))
        raise AssertionError(
            f"Pallas output does not match JAX reference (max abs err {max_err})")

    print("KERNEL_OK")
</pallas_src>

<mosaic_0001>
module attributes {stable_mosaic.version = 11 : i64} {
  func.func @_fused_net_kernel(%arg0: i32, %arg1: memref<288x162xbf16, #tpu.memory_space<vmem>>, %arg2: memref<162x288xbf16, #tpu.memory_space<vmem>>, %arg3: memref<1x288xf32, #tpu.memory_space<vmem>>, %arg4: memref<288x64xbf16, #tpu.memory_space<vmem>>, %arg5: memref<1x64xf32, #tpu.memory_space<vmem>>, %arg6: memref<576x512xbf16, #tpu.memory_space<vmem>>, %arg7: memref<1x512xf32, #tpu.memory_space<vmem>>, %arg8: memref<512x128xbf16, #tpu.memory_space<vmem>>, %arg9: memref<1x128xf32, #tpu.memory_space<vmem>>, %arg10: memref<8x128xf32, #tpu.memory_space<vmem>>) attributes {dimension_semantics = [#tpu.dimension_semantics<parallel>], iteration_bounds = array<i64: 1>, scalar_prefetch = 0 : i64, scratch_operands = 0 : i64, tpu.core_type = #tpu.core_type<tc>, window_params = [{transform_indices = @transform_0, window_bounds = array<i64: 288, 162>}, {pipeline_mode = #tpu.pipeline_mode<synchronous>, transform_indices = @transform_1, window_bounds = array<i64: 162, 288>}, {pipeline_mode = #tpu.pipeline_mode<synchronous>, transform_indices = @transform_2, window_bounds = array<i64: 1, 288>}, {pipeline_mode = #tpu.pipeline_mode<synchronous>, transform_indices = @transform_3, window_bounds = array<i64: 288, 64>}, {pipeline_mode = #tpu.pipeline_mode<synchronous>, transform_indices = @transform_4, window_bounds = array<i64: 1, 64>}, {pipeline_mode = #tpu.pipeline_mode<synchronous>, transform_indices = @transform_5, window_bounds = array<i64: 576, 512>}, {pipeline_mode = #tpu.pipeline_mode<synchronous>, transform_indices = @transform_6, window_bounds = array<i64: 1, 512>}, {pipeline_mode = #tpu.pipeline_mode<synchronous>, transform_indices = @transform_7, window_bounds = array<i64: 512, 128>}, {pipeline_mode = #tpu.pipeline_mode<synchronous>, transform_indices = @transform_8, window_bounds = array<i64: 1, 128>}, {transform_indices = @transform_9, window_bounds = array<i64: 8, 128>}]} {
    %c0 = arith.constant 0 : index
    %c0_0 = arith.constant 0 : index
    %0 = vector.load %arg1[%c0, %c0_0] : memref<288x162xbf16, #tpu.memory_space<vmem>>, vector<288x162xbf16>
    %c0_1 = arith.constant 0 : index
    %c0_2 = arith.constant 0 : index
    %1 = vector.load %arg2[%c0_1, %c0_2] : memref<162x288xbf16, #tpu.memory_space<vmem>>, vector<162x288xbf16>
    %cst = arith.constant dense<0.000000e+00> : vector<288x288xf32>
    %2 = tpu.matmul %0, %1, %cst {dimension_numbers = #tpu.dot_dimension_numbers<[1], [0], [0], [1], [0, 0, 1, 1], [], []>} : vector<288x162xbf16>, vector<162x288xbf16>, vector<288x288xf32> -> vector<288x288xf32>
    %c0_3 = arith.constant 0 : index
    %c0_4 = arith.constant 0 : index
    %3 = vector.load %arg3[%c0_3, %c0_4] : memref<1x288xf32, #tpu.memory_space<vmem>>, vector<1x288xf32>
    %4 = vector.broadcast %3 : vector<1x288xf32> to vector<288x288xf32>
    %5 = arith.addf %2, %4 : vector<288x288xf32>
    %cst_5 = arith.constant 0.000000e+00 : f32
    %6 = vector.broadcast %cst_5 : f32 to vector<288x288xf32>
    %7 = arith.maximumf %5, %6 : vector<288x288xf32>
    %8 = arith.truncf %7 : vector<288x288xf32> to vector<288x288xbf16>
    %c0_6 = arith.constant 0 : index
    %c0_7 = arith.constant 0 : index
    %9 = vector.load %arg4[%c0_6, %c0_7] : memref<288x64xbf16, #tpu.memory_space<vmem>>, vector<288x64xbf16>
    %cst_8 = arith.constant dense<0.000000e+00> : vector<288x64xf32>
    %10 = tpu.matmul %8, %9, %cst_8 {dimension_numbers = #tpu.dot_dimension_numbers<[1], [0], [0], [1], [0, 0, 1, 1], [], []>} : vector<288x288xbf16>, vector<288x64xbf16>, vector<288x64xf32> -> vector<288x64xf32>
    %c0_9 = arith.constant 0 : index
    %c0_10 = arith.constant 0 : index
    %11 = vector.load %arg5[%c0_9, %c0_10] : memref<1x64xf32, #tpu.memory_space<vmem>>, vector<1x64xf32>
    %12 = vector.broadcast %11 : vector<1x64xf32> to vector<288x64xf32>
    %13 = arith.addf %10, %12 : vector<288x64xf32>
    %cst_11 = arith.constant 0.000000e+00 : f32
    %14 = vector.broadcast %cst_11 : f32 to vector<288x64xf32>
    %15 = arith.maximumf %13, %14 : vector<288x64xf32>
    %16 = vector.extract_strided_slice %15 {offsets = [0, 0], sizes = [72, 64], strides = [1, 1]} : vector<288x64xf32> to vector<72x64xf32>
    %17 = vector.extract_strided_slice %15 {offsets = [72, 0], sizes = [72, 64], strides = [1, 1]} : vector<288x64xf32> to vector<72x64xf32>
    %18 = arith.maximumf %16, %17 : vector<72x64xf32>
    %19 = vector.extract_strided_slice %15 {offsets = [144, 0], sizes = [72, 64], strides = [1, 1]} : vector<288x64xf32> to vector<72x64xf32>
    %20 = vector.extract_strided_slice %15 {offsets = [216, 0], sizes = [72, 64], strides = [1, 1]} : vector<288x64xf32> to vector<72x64xf32>
    %21 = arith.maximumf %19, %20 : vector<72x64xf32>
    %22 = arith.maximumf %18, %21 : vector<72x64xf32>
    %23 = vector.extract_strided_slice %22 {offsets = [0, 0], sizes = [8, 64], strides = [1, 1]} : vector<72x64xf32> to vector<8x64xf32>
    %24 = vector.extract_strided_slice %22 {offsets = [8, 0], sizes = [8, 64], strides = [1, 1]} : vector<72x64xf32> to vector<8x64xf32>
    %25 = vector.extract_strided_slice %22 {offsets = [16, 0], sizes = [8, 64], strides = [1, 1]} : vector<72x64xf32> to vector<8x64xf32>
    %26 = vector.extract_strided_slice %22 {offsets = [24, 0], sizes = [8, 64], strides = [1, 1]} : vector<72x64xf32> to vector<8x64xf32>
    %27 = vector.extract_strided_slice %22 {offsets = [32, 0], sizes = [8, 64], strides = [1, 1]} : vector<72x64xf32> to vector<8x64xf32>
    %28 = vector.extract_strided_slice %22 {offsets = [40, 0], sizes = [8, 64], strides = [1, 1]} : vector<72x64xf32> to vector<8x64xf32>
    %29 = vector.extract_strided_slice %22 {offsets = [48, 0], sizes = [8, 64], strides = [1, 1]} : vector<72x64xf32> to vector<8x64xf32>
    %30 = vector.extract_strided_slice %22 {offsets = [56, 0], sizes = [8, 64], strides = [1, 1]} : vector<72x64xf32> to vector<8x64xf32>
    %31 = vector.extract_strided_slice %22 {offsets = [64, 0], sizes = [8, 64], strides = [1, 1]} : vector<72x64xf32> to vector<8x64xf32>
    %32 = tpu.concatenate %23, %24, %25, %26, %27, %28, %29, %30, %31 in 1 : vector<8x64xf32>, vector<8x64xf32>, vector<8x64xf32>, vector<8x64xf32>, vector<8x64xf32>, vector<8x64xf32>, vector<8x64xf32>, vector<8x64xf32>, vector<8x64xf32> -> vector<8x576xf32>
    %33 = arith.truncf %32 : vector<8x576xf32> to vector<8x576xbf16>
    %c0_12 = arith.constant 0 : index
    %c0_13 = arith.constant 0 : index
    %34 = vector.load %arg6[%c0_12, %c0_13] : memref<576x512xbf16, #tpu.memory_space<vmem>>, vector<576x512xbf16>
    %cst_14 = arith.constant dense<0.000000e+00> : vector<8x512xf32>
    %35 = tpu.matmul %33, %34, %cst_14 {dimension_numbers = #tpu.dot_dimension_numbers<[1], [0], [0], [1], [0, 0, 1, 1], [], []>} : vector<8x576xbf16>, vector<576x512xbf16>, vector<8x512xf32> -> vector<8x512xf32>
    %c0_15 = arith.constant 0 : index
    %c0_16 = arith.constant 0 : index
    %36 = vector.load %arg7[%c0_15, %c0_16] : memref<1x512xf32, #tpu.memory_space<vmem>>, vector<1x512xf32>
    %37 = vector.broadcast %36 : vector<1x512xf32> to vector<8x512xf32>
    %38 = arith.addf %35, %37 : vector<8x512xf32>
    %cst_17 = arith.constant 0.000000e+00 : f32
    %39 = vector.broadcast %cst_17 : f32 to vector<8x512xf32>
    %40 = arith.maximumf %38, %39 : vector<8x512xf32>
    %41 = arith.truncf %40 : vector<8x512xf32> to vector<8x512xbf16>
    %c0_18 = arith.constant 0 : index
    %c0_19 = arith.constant 0 : index
    %42 = vector.load %arg8[%c0_18, %c0_19] : memref<512x128xbf16, #tpu.memory_space<vmem>>, vector<512x128xbf16>
    %cst_20 = arith.constant dense<0.000000e+00> : vector<8x128xf32>
    %43 = tpu.matmul %41, %42, %cst_20 {dimension_numbers = #tpu.dot_dimension_numbers<[1], [0], [0], [1], [0, 0, 1, 1], [], []>} : vector<8x512xbf16>, vector<512x128xbf16>, vector<8x128xf32> -> vector<8x128xf32>
    %c0_21 = arith.constant 0 : index
    %c0_22 = arith.constant 0 : index
    %44 = vector.load %arg9[%c0_21, %c0_22] : memref<1x128xf32, #tpu.memory_space<vmem>>, vector<1x128xf32>
    %45 = vector.broadcast %44 : vector<1x128xf32> to vector<8x128xf32>
    %46 = arith.addf %43, %45 : vector<8x128xf32>
    %c0_23 = arith.constant 0 : index
    %c0_24 = arith.constant 0 : index
    %47 = vector.load %arg10[%c0_23, %c0_24] : memref<8x128xf32, #tpu.memory_space<vmem>>, vector<8x128xf32>
    tpu.vector_store %arg10[%c0_23, %c0_24], %46 {strides = array<i32>} : memref<8x128xf32, #tpu.memory_space<vmem>>, vector<8x128xf32>,
    return
  }
  func.func @transform_0(%arg0: i32) -> (i32, i32) {
    %c0_i32 = arith.constant 0 : i32
    %c0_i32_0 = arith.constant 0 : i32
    return %arg0, %c0_i32 : i32, i32
  }
  func.func @transform_1(%arg0: i32) -> (i32, i32) {
    %c0_i32 = arith.constant 0 : i32
    %c0_i32_0 = arith.constant 0 : i32
    %c0_i32_1 = arith.constant 0 : i32
    return %c0_i32, %c0_i32_0 : i32, i32
  }
  func.func @transform_2(%arg0: i32) -> (i32, i32) {
    %c0_i32 = arith.constant 0 : i32
    %c0_i32_0 = arith.constant 0 : i32
    %c0_i32_1 = arith.constant 0 : i32
    return %c0_i32, %c0_i32_0 : i32, i32
  }
  func.func @transform_3(%arg0: i32) -> (i32, i32) {
    %c0_i32 = arith.constant 0 : i32
    %c0_i32_0 = arith.constant 0 : i32
    %c0_i32_1 = arith.constant 0 : i32
    return %c0_i32, %c0_i32_0 : i32, i32
  }
  func.func @transform_4(%arg0: i32) -> (i32, i32) {
    %c0_i32 = arith.constant 0 : i32
    %c0_i32_0 = arith.constant 0 : i32
    %c0_i32_1 = arith.constant 0 : i32
    return %c0_i32, %c0_i32_0 : i32, i32
  }
  func.func @transform_5(%arg0: i32) -> (i32, i32) {
    %c0_i32 = arith.constant 0 : i32
    %c0_i32_0 = arith.constant 0 : i32
    %c0_i32_1 = arith.constant 0 : i32
    return %c0_i32, %c0_i32_0 : i32, i32
  }
  func.func @transform_6(%arg0: i32) -> (i32, i32) {
    %c0_i32 = arith.constant 0 : i32
    %c0_i32_0 = arith.constant 0 : i32
    %c0_i32_1 = arith.constant 0 : i32
    return %c0_i32, %c0_i32_0 : i32, i32
  }
  func.func @transform_7(%arg0: i32) -> (i32, i32) {
    %c0_i32 = arith.constant 0 : i32
    %c0_i32_0 = arith.constant 0 : i32
    %c0_i32_1 = arith.constant 0 : i32
    return %c0_i32, %c0_i32_0 : i32, i32
  }
  func.func @transform_8(%arg0: i32) -> (i32, i32) {
    %c0_i32 = arith.constant 0 : i32
    %c0_i32_0 = arith.constant 0 : i32
    %c0_i32_1 = arith.constant 0 : i32
    return %c0_i32, %c0_i32_0 : i32, i32
  }
  func.func @transform_9(%arg0: i32) -> (i32, i32) {
    %c0_i32 = arith.constant 0 : i32
    %c0_i32_0 = arith.constant 0 : i32
    return %arg0, %c0_i32 : i32, i32
  }
}

</mosaic_0001>

<llo_original>
// kernel: net_forward.1
$region0: #{net_forward.1}
  #allocation0 [shape = 'u32[]', space=smem, size = 0x4, offset = 0x4, fixed_abs, tag = 'smem constant byte address 0x4 - core index']
  #allocation1 [shape = 'u32[144,128]{1,0:T(1,128)}', space=vmem, size = 0x12000, scoped, tag = 'internal scratch']
  %s0 = inlined_call_operand.vmem [shape: bf16[288,162], index: 0, kind: input, shape index: {}]
  %s1 = inlined_call_operand.vmem [shape: bf16[162,288], index: 1, kind: input, shape index: {}]
  %s2 = inlined_call_operand.vmem [shape: f32[1,288], index: 2, kind: input, shape index: {}]
  %s3 = inlined_call_operand.vmem [shape: bf16[288,64], index: 3, kind: input, shape index: {}]
  %s4 = inlined_call_operand.vmem [shape: f32[1,64], index: 4, kind: input, shape index: {}]
  %s5 = inlined_call_operand.vmem [shape: bf16[576,512], index: 5, kind: input, shape index: {}]
  %s6 = inlined_call_operand.vmem [shape: f32[1,512], index: 6, kind: input, shape index: {}]
  %s7 = inlined_call_operand.vmem [shape: bf16[512,128], index: 7, kind: input, shape index: {}]
  %s8 = inlined_call_operand.vmem [shape: f32[1,128], index: 8, kind: input, shape index: {}]
  %s9 = inlined_call_operand.vmem [shape: f32[8,128], index: 9, kind: output, shape index: {}]
  %s10 = sld [smem:[#allocation0]]
  $region46: #{net_forward.1} parent=0
    _
  %s12 = ssub.s32 1, %s10
  %s13 = scalar_select 0, %s12, %s10
  // Predicated region
  $region2: #{net_forward.1} parent=0 // pred_check
    _
  $region3: #{net_forward.1} parent=0 // pred_check_branch
    %15 = sbr.rel (0) target = $region5
  $region4: #{net_forward.1} parent=0 // pred_region
    _
  $region5: #{net_forward.1} parent=0 // pred_fallthru
    _
  // Predicated region
  $region6: #{net_forward.1} parent=0 // pred_check
    _
  $region7: #{net_forward.1} parent=0 // pred_check_branch
    %17 = sbr.rel (0) target = $region9
  $region8: #{net_forward.1} parent=0 // pred_region
    _
  $region9: #{net_forward.1} parent=0 // pred_fallthru
    _
  // Predicated region
  $region10: #{net_forward.1} parent=0 // pred_check
    _
  $region11: #{net_forward.1} parent=0 // pred_check_branch
    %19 = sbr.rel (0) target = $region13
  $region12: #{net_forward.1} parent=0 // pred_region
    _
  $region13: #{net_forward.1} parent=0 // pred_fallthru
    _
  // Predicated region
  $region14: #{net_forward.1} parent=0 // pred_check
    _
  $region15: #{net_forward.1} parent=0 // pred_check_branch
    %21 = sbr.rel (0) target = $region17
  $region16: #{net_forward.1} parent=0 // pred_region
    _
  $region17: #{net_forward.1} parent=0 // pred_fallthru
    _
  // Predicated region
  $region18: #{net_forward.1} parent=0 // pred_check
    _
  $region19: #{net_forward.1} parent=0 // pred_check_branch
    %23 = sbr.rel (0) target = $region21
  $region20: #{net_forward.1} parent=0 // pred_region
    _
  $region21: #{net_forward.1} parent=0 // pred_fallthru
    _
  // Predicated region
  $region22: #{net_forward.1} parent=0 // pred_check
    _
  $region23: #{net_forward.1} parent=0 // pred_check_branch
    %25 = sbr.rel (0) target = $region25
  $region24: #{net_forward.1} parent=0 // pred_region
    _
  $region25: #{net_forward.1} parent=0 // pred_fallthru
    _
  // Predicated region
  $region26: #{net_forward.1} parent=0 // pred_check
    _
  $region27: #{net_forward.1} parent=0 // pred_check_branch
    %27 = sbr.rel (0) target = $region29
  $region28: #{net_forward.1} parent=0 // pred_region
    _
  $region29: #{net_forward.1} parent=0 // pred_fallthru
    _
  // Predicated region
  $region30: #{net_forward.1} parent=0 // pred_check
    _
  $region31: #{net_forward.1} parent=0 // pred_check_branch
    %29 = sbr.rel (0) target = $region33
  $region32: #{net_forward.1} parent=0 // pred_region
    _
  $region33: #{net_forward.1} parent=0 // pred_fallthru
    _
  // Predicated region
  $region34: #{net_forward.1} parent=0 // pred_check
    _
  $region35: #{net_forward.1} parent=0 // pred_check_branch
    %31 = sbr.rel (0) target = $region37
  $region36: #{net_forward.1} parent=0 // pred_region
    _
  $region37: #{net_forward.1} parent=0 // pred_fallthru
    _
  %v33 = vld [vmem:[%s0] sm:$0xff]
  %v34 = vld [vmem:[%s0 + $0x8] sm:$0xff]
  %v35 = vld [vmem:[%s0 + $0x10] sm:$0xff]
  %v36 = vld [vmem:[%s0 + $0x18] sm:$0xff]
  %v37 = vld [vmem:[%s0 + $0x20] sm:$0xff]
  %v38 = vld [vmem:[%s0 + $0x28] sm:$0xff]
  %v39 = vld [vmem:[%s0 + $0x30] sm:$0xff]
  %v40 = vld [vmem:[%s0 + $0x38] sm:$0xff]
  %v41 = vld [vmem:[%s0 + $0x40] sm:$0xff]
  %v42 = vld [vmem:[%s0 + $0x48] sm:$0xff]
  %v43 = vld [vmem:[%s0 + $0x50] sm:$0xff]
  %v44 = vld [vmem:[%s0 + $0x58] sm:$0xff]
  %v45 = vld [vmem:[%s0 + $0x60] sm:$0xff]
  %v46 = vld [vmem:[%s0 + $0x68] sm:$0xff]
  %v47 = vld [vmem:[%s0 + $0x70] sm:$0xff]
  %v48 = vld [vmem:[%s0 + $0x78] sm:$0xff]
  %v49 = vld [vmem:[%s0 + $0x80] sm:$0xff]
  %v50 = vld [vmem:[%s0 + $0x88] sm:$0xff]
  %v51 = vld [vmem:[%s0 + $0x90] sm:$0xff]
  %v52 = vld [vmem:[%s0 + $0x98] sm:$0xff]
  %v53 = vld [vmem:[%s0 + $0xa0] sm:$0xff]
  %v54 = vld [vmem:[%s0 + $0xa8] sm:$0xff]
  %v55 = vld [vmem:[%s0 + $0xb0] sm:$0xff]
  %v56 = vld [vmem:[%s0 + $0xb8] sm:$0xff]
  %v57 = vld [vmem:[%s0 + $0xc0] sm:$0xff]
  %v58 = vld [vmem:[%s0 + $0xc8] sm:$0xff]
  %v59 = vld [vmem:[%s0 + $0xd0] sm:$0xff]
  %v60 = vld [vmem:[%s0 + $0xd8] sm:$0xff]
  %v61 = vld [vmem:[%s0 + $0xe0] sm:$0xff]
  %v62 = vld [vmem:[%s0 + $0xe8] sm:$0xff]
  %v63 = vld [vmem:[%s0 + $0xf0] sm:$0xff]
  %v64 = vld [vmem:[%s0 + $0xf8] sm:$0xff]
  %v65 = vld [vmem:[%s0 + $0x100] sm:$0xff]
  %v66 = vld [vmem:[%s0 + $0x108] sm:$0xff]
  %v67 = vld [vmem:[%s0 + $0x110] sm:$0xff]
  %v68 = vld [vmem:[%s0 + $0x118] sm:$0xff]
  %v69 = vld [vmem:[%s1] sm:$0xff]
  %v70 = vld [vmem:[%s1 + $0x8] sm:$0xf]
  %v71 = vld [vmem:[%s1 + $0xc] sm:$0xff]
  %v72 = vld [vmem:[%s1 + $0x14] sm:$0xf]
  %v73 = vld [vmem:[%s1 + $0x18] sm:$0xff]
  %v74 = vld [vmem:[%s1 + $0x20] sm:$0xf]
  %v75 = vld [vmem:[%s1 + $0x24] sm:$0xff]
  %v76 = vld [vmem:[%s1 + $0x2c] sm:$0xf]
  %v77 = vld [vmem:[%s1 + $0x30] sm:$0xff]
  %v78 = vld [vmem:[%s1 + $0x38] sm:$0xf]
  %v79 = vld [vmem:[%s1 + $0x3c] sm:$0xff]
  %v80 = vld [vmem:[%s1 + $0x44] sm:$0xf]
  %v81 = vld [vmem:[%s1 + $0x48] sm:$0xff]
  %v82 = vld [vmem:[%s1 + $0x50] sm:$0xf]
  %v83 = vld [vmem:[%s1 + $0x54] sm:$0xff]
  %v84 = vld [vmem:[%s1 + $0x5c] sm:$0xf]
  %v85 = vld [vmem:[%s1 + $0x60] sm:$0xff]
  %v86 = vld [vmem:[%s1 + $0x68] sm:$0xf]
  %v87 = vld [vmem:[%s1 + $0x6c] sm:$0xff]
  %v88 = vld [vmem:[%s1 + $0x74] sm:$0xf]
  %v89 = vld [vmem:[%s1 + $0x78] sm:$0xff]
  %v90 = vld [vmem:[%s1 + $0x80] sm:$0xf]
  %v91 = vld [vmem:[%s1 + $0x84] sm:$0xff]
  %v92 = vld [vmem:[%s1 + $0x8c] sm:$0xf]
  %v93 = vld [vmem:[%s1 + $0x90] sm:$0xff]
  %v94 = vld [vmem:[%s1 + $0x98] sm:$0xf]
  %v95 = vld [vmem:[%s1 + $0x9c] sm:$0xff]
  %v96 = vld [vmem:[%s1 + $0xa4] sm:$0xf]
  %v97 = vld [vmem:[%s1 + $0xa8] sm:$0xff]
  %v98 = vld [vmem:[%s1 + $0xb0] sm:$0xf]
  %v99 = vld [vmem:[%s1 + $0xb4] sm:$0xff]
  %v100 = vld [vmem:[%s1 + $0xbc] sm:$0xf]
  %v101 = vld [vmem:[%s1 + $0xc0] sm:$0xff]
  %v102 = vld [vmem:[%s1 + $0xc8] sm:$0xf]
  %v103 = vld [vmem:[%s1 + $0xcc] sm:$0xff]
  %v104 = vld [vmem:[%s1 + $0xd4] sm:$0xf]
  %v105 = vld [vmem:[%s1 + $0xd8] sm:$0xff]
  %v106 = vld [vmem:[%s1 + $0xe0] sm:$0xf]
  %v107 = vld [vmem:[%s1 + $0xe4] sm:$0xff]
  %v108 = vld [vmem:[%s1 + $0xec] sm:$0xf]
  %v109 = vld [vmem:[%s1 + $0xf0] sm:$0x11]
  %v110 = vld [vmem:[%s1 + $0xf8] sm:$0x1]
  %v111 = vld [vmem:[%s2] sm:$0x7]
  %v113 = vlaneseq
  %v114 = vshrl.u32 %v113, 7
  %v115 = vsub.s32 0, %v114
  %v116 = vrot.slane %v111, %v115
  %v117 = vlaneseq
  %v118 = vshrl.u32 %v117, 7
  %v119 = vsub.s32 1, %v118
  %v120 = vrot.slane %v111, %v119
  %v121 = vlaneseq
  %v122 = vshrl.u32 %v121, 7
  %v123 = vsub.s32 2, %v122
  %v124 = vrot.slane %v111, %v123
  %v164 = vunpack.c.l.b16 %v33
  %v165 = vunpack.c.h.b16 %v33
  %v166 = vunpack.c.l.b16 %v34
  %v167 = vunpack.c.h.b16 %v34
  %v168 = vunpack.c.l.b16 %v35
  %v169 = vunpack.c.h.b16 %v35
  %v170 = vunpack.c.l.b16 %v36
  %v171 = vunpack.c.h.b16 %v36
  %v172 = vunpack.c.l.b16 %v37
  %v173 = vunpack.c.h.b16 %v37
  %v174 = vunpack.c.l.b16 %v38
  %v175 = vunpack.c.h.b16 %v38
  %v176 = vunpack.c.l.b16 %v39
  %v177 = vunpack.c.h.b16 %v39
  %v178 = vunpack.c.l.b16 %v40
  %v179 = vunpack.c.h.b16 %v40
  %v180 = vunpack.c.l.b16 %v41
  %v181 = vunpack.c.h.b16 %v41
  %v182 = vunpack.c.l.b16 %v42
  %v183 = vunpack.c.h.b16 %v42
  %v184 = vunpack.c.l.b16 %v43
  %v185 = vunpack.c.h.b16 %v43
  %v186 = vunpack.c.l.b16 %v44
  %v187 = vunpack.c.h.b16 %v44
  %v188 = vunpack.c.l.b16 %v45
  %v189 = vunpack.c.h.b16 %v45
  %v190 = vunpack.c.l.b16 %v46
  %v191 = vunpack.c.h.b16 %v46
  %v192 = vunpack.c.l.b16 %v47
  %v193 = vunpack.c.h.b16 %v47
  %v194 = vunpack.c.l.b16 %v48
  %v195 = vunpack.c.h.b16 %v48
  %v196 = vunpack.c.l.b16 %v49
  %v197 = vunpack.c.h.b16 %v49
  %v198 = vunpack.c.l.b16 %v50
  %v199 = vunpack.c.h.b16 %v50
  %v200 = vunpack.c.l.b16 %v51
  %v201 = vunpack.c.h.b16 %v51
  %v202 = vunpack.c.l.b16 %v52
  %v203 = vunpack.c.h.b16 %v52
  %v204 = vunpack.c.l.b16 %v53
  %v205 = vunpack.c.h.b16 %v53
  %v206 = vunpack.c.l.b16 %v54
  %v207 = vunpack.c.h.b16 %v54
  %v208 = vunpack.c.l.b16 %v55
  %v209 = vunpack.c.h.b16 %v55
  %v210 = vunpack.c.l.b16 %v56
  %v211 = vunpack.c.h.b16 %v56
  %v212 = vunpack.c.l.b16 %v57
  %v213 = vunpack.c.h.b16 %v57
  %v214 = vunpack.c.l.b16 %v58
  %v215 = vunpack.c.h.b16 %v58
  %v216 = vunpack.c.l.b16 %v59
  %v217 = vunpack.c.h.b16 %v59
  %v218 = vunpack.c.l.b16 %v60
  %v219 = vunpack.c.h.b16 %v60
  %v220 = vunpack.c.l.b16 %v61
  %v221 = vunpack.c.h.b16 %v61
  %v222 = vunpack.c.l.b16 %v62
  %v223 = vunpack.c.h.b16 %v62
  %v224 = vunpack.c.l.b16 %v63
  %v225 = vunpack.c.h.b16 %v63
  %v226 = vunpack.c.l.b16 %v64
  %v227 = vunpack.c.h.b16 %v64
  %v228 = vunpack.c.l.b16 %v65
  %v229 = vunpack.c.h.b16 %v65
  %v230 = vunpack.c.l.b16 %v66
  %v231 = vunpack.c.h.b16 %v66
  %v232 = vunpack.c.l.b16 %v67
  %v233 = vunpack.c.h.b16 %v67
  %v234 = vunpack.c.l.b16 %v68
  %v235 = vunpack.c.h.b16 %v68
  %v236 = vpack.c.b16 %v166, %v164
  %v237 = vpack.c.b16 %v167, %v165
  %v238 = vpack.c.b16 %v170, %v168
  %v239 = vpack.c.b16 %v171, %v169
  %v240 = vpack.c.b16 %v174, %v172
  %v241 = vpack.c.b16 %v175, %v173
  %v242 = vpack.c.b16 %v178, %v176
  %v243 = vpack.c.b16 %v179, %v177
  %v244 = vpack.c.b16 %v182, %v180
  %v245 = vpack.c.b16 %v183, %v181
  %v246 = vpack.c.b16 %v186, %v184
  %v247 = vpack.c.b16 %v187, %v185
  %v248 = vpack.c.b16 %v190, %v188
  %v249 = vpack.c.b16 %v191, %v189
  %v250 = vpack.c.b16 %v194, %v192
  %v251 = vpack.c.b16 %v195, %v193
  %v252 = vpack.c.b16 %v198, %v196
  %v253 = vpack.c.b16 %v199, %v197
  %v254 = vpack.c.b16 %v202, %v200
  %v255 = vpack.c.b16 %v203, %v201
  %v256 = vpack.c.b16 %v206, %v204
  %v257 = vpack.c.b16 %v207, %v205
  %v258 = vpack.c.b16 %v210, %v208
  %v259 = vpack.c.b16 %v211, %v209
  %v260 = vpack.c.b16 %v214, %v212
  %v261 = vpack.c.b16 %v215, %v213
  %v262 = vpack.c.b16 %v218, %v216
  %v263 = vpack.c.b16 %v219, %v217
  %v264 = vpack.c.b16 %v222, %v220
  %v265 = vpack.c.b16 %v223, %v221
  %v266 = vpack.c.b16 %v226, %v224
  %v267 = vpack.c.b16 %v227, %v225
  %v268 = vpack.c.b16 %v230, %v228
  %v269 = vpack.c.b16 %v231, %v229
  %v270 = vpack.c.b16 %v234, %v232
  %v271 = vpack.c.b16 %v235, %v233
  %v332 = vunpack.c.l.b16 %v69
  %v333 = vunpack.c.h.b16 %v69
  %v334 = vunpack.c.l.b16 %v70
  %v335 = vunpack.c.l.b16 %v71
  %v336 = vunpack.c.h.b16 %v71
  %v337 = vunpack.c.l.b16 %v72
  %v338 = vunpack.c.l.b16 %v73
  %v339 = vunpack.c.h.b16 %v73
  %v340 = vunpack.c.l.b16 %v74
  %v341 = vunpack.c.l.b16 %v75
  %v342 = vunpack.c.h.b16 %v75
  %v343 = vunpack.c.l.b16 %v76
  %v344 = vunpack.c.l.b16 %v77
  %v345 = vunpack.c.h.b16 %v77
  %v346 = vunpack.c.l.b16 %v78
  %v347 = vunpack.c.l.b16 %v79
  %v348 = vunpack.c.h.b16 %v79
  %v349 = vunpack.c.l.b16 %v80
  %v350 = vunpack.c.l.b16 %v81
  %v351 = vunpack.c.h.b16 %v81
  %v352 = vunpack.c.l.b16 %v82
  %v353 = vunpack.c.l.b16 %v83
  %v354 = vunpack.c.h.b16 %v83
  %v355 = vunpack.c.l.b16 %v84
  %v356 = vunpack.c.l.b16 %v85
  %v357 = vunpack.c.h.b16 %v85
  %v358 = vunpack.c.l.b16 %v86
  %v359 = vunpack.c.l.b16 %v87
  %v360 = vunpack.c.h.b16 %v87
  %v361 = vunpack.c.l.b16 %v88
  %v362 = vunpack.c.l.b16 %v89
  %v363 = vunpack.c.h.b16 %v89
  %v364 = vunpack.c.l.b16 %v90
  %v365 = vunpack.c.l.b16 %v91
  %v366 = vunpack.c.h.b16 %v91
  %v367 = vunpack.c.l.b16 %v92
  %v368 = vunpack.c.l.b16 %v93
  %v369 = vunpack.c.h.b16 %v93
  %v370 = vunpack.c.l.b16 %v94
  %v371 = vunpack.c.l.b16 %v95
  %v372 = vunpack.c.h.b16 %v95
  %v373 = vunpack.c.l.b16 %v96
  %v374 = vunpack.c.l.b16 %v97
  %v375 = vunpack.c.h.b16 %v97
  %v376 = vunpack.c.l.b16 %v98
  %v377 = vunpack.c.l.b16 %v99
  %v378 = vunpack.c.h.b16 %v99
  %v379 = vunpack.c.l.b16 %v100
  %v380 = vunpack.c.l.b16 %v101
  %v381 = vunpack.c.h.b16 %v101
  %v382 = vunpack.c.l.b16 %v102
  %v383 = vunpack.c.l.b16 %v103
  %v384 = vunpack.c.h.b16 %v103
  %v385 = vunpack.c.l.b16 %v104
  %v386 = vunpack.c.l.b16 %v105
  %v387 = vunpack.c.h.b16 %v105
  %v388 = vunpack.c.l.b16 %v106
  %v389 = vunpack.c.l.b16 %v107
  %v390 = vunpack.c.h.b16 %v107
  %v391 = vunpack.c.l.b16 %v108
  %v392 = vunpack.c.l.b16 %v109
  %v393 = vunpack.c.h.b16 %v109
  %v394 = vunpack.c.l.b16 %v110
  %v395 = vpack.c.b16 %v335, %v332
  %v396 = vpack.c.b16 %v336, %v333
  %v397 = vpack.c.b16 %v337, %v334
  %v398 = vpack.c.b16 %v341, %v338
  %v399 = vpack.c.b16 %v342, %v339
  %v400 = vpack.c.b16 %v343, %v340
  %v401 = vpack.c.b16 %v347, %v344
  %v402 = vpack.c.b16 %v348, %v345
  %v403 = vpack.c.b16 %v349, %v346
  %v404 = vpack.c.b16 %v353, %v350
  %v405 = vpack.c.b16 %v354, %v351
  %v406 = vpack.c.b16 %v355, %v352
  %v407 = vpack.c.b16 %v359, %v356
  %v408 = vpack.c.b16 %v360, %v357
  %v409 = vpack.c.b16 %v361, %v358
  %v410 = vpack.c.b16 %v365, %v362
  %v411 = vpack.c.b16 %v366, %v363
  %v412 = vpack.c.b16 %v367, %v364
  %v413 = vpack.c.b16 %v371, %v368
  %v414 = vpack.c.b16 %v372, %v369
  %v415 = vpack.c.b16 %v373, %v370
  %v416 = vpack.c.b16 %v377, %v374
  %v417 = vpack.c.b16 %v378, %v375
  %v418 = vpack.c.b16 %v379, %v376
  %v419 = vpack.c.b16 %v383, %v380
  %v420 = vpack.c.b16 %v384, %v381
  %v421 = vpack.c.b16 %v385, %v382
  %v422 = vpack.c.b16 %v389, %v386
  %v423 = vpack.c.b16 %v390, %v387
  %v424 = vpack.c.b16 %v391, %v388
  %v425 = vpack.c.b16 %v392, %v392
  %v426 = vpack.c.b16 %v393, %v393
  %v427 = vpack.c.b16 %v394, %v394
  %vm458 = vcmask 277504
  %v460 = vsel %vm458, %v237, 0
  %v463 = vsel %vm458, %v239, 0
  %v466 = vsel %vm458, %v241, 0
  %v469 = vsel %vm458, %v243, 0
  %v472 = vsel %vm458, %v245, 0
  %v475 = vsel %vm458, %v247, 0
  %v478 = vsel %vm458, %v249, 0
  %v481 = vsel %vm458, %v251, 0
  %v484 = vsel %vm458, %v253, 0
  %v487 = vsel %vm458, %v255, 0
  %v490 = vsel %vm458, %v257, 0
  %v493 = vsel %vm458, %v259, 0
  %v496 = vsel %vm458, %v261, 0
  %v499 = vsel %vm458, %v263, 0
  %v502 = vsel %vm458, %v265, 0
  %v505 = vsel %vm458, %v267, 0
  %v508 = vsel %vm458, %v269, 0
  %v511 = vsel %vm458, %v271, 0
  %vm513 = vcmask 1040384
  %v515 = vsel %vm513, %v425, 0
  %v518 = vsel %vm513, %v426, 0
  %v521 = vsel %vm513, %v427, 0
  %523 = vmatprep.subr.bf16.mxu0 %v396
  %524 = vmatpush1.bf16.msra.mxu0 %v395
  %525 = vmatprep.subr.bf16.mxu0 %v399
  %526 = vmatpush1.bf16.msra.mxu0 %v398
  %527 = vmatprep.subr.bf16.mxu0 %v402
  %528 = vmatpush1.bf16.msra.mxu0 %v401
  %529 = vmatprep.subr.bf16.mxu0 %v405
  %530 = vmatpush1.bf16.msra.mxu0 %v404
  %531 = vmatprep.subr.bf16.mxu0 %v408
  %532 = vmatpush1.bf16.msra.mxu0 %v407
  %533 = vmatprep.subr.bf16.mxu0 %v411
  %534 = vmatpush1.bf16.msra.mxu0 %v410
  %535 = vmatprep.subr.bf16.mxu0 %v414
  %536 = vmatpush1.bf16.msra.mxu0 %v413
  %537 = vmatprep.subr.bf16.mxu0 %v417
  %538 = vmatpush1.bf16.msra.mxu0 %v416
  %539 = vmatprep.subr.bf16.mxu0 %v420
  %540 = vmatpush1.bf16.msra.mxu0 %v419
  %541 = vmatprep.subr.bf16.mxu0 %v423
  %542 = vmatpush1.bf16.msra.mxu0 %v422
  %543 = vmatprep.subr.bf16.mxu0 %v518
  %544 = vmatpush1.bf16.msra.mxu0 %v515
  %545 = vmatprep.subr.bf16.mxu0 0
  %546 = vmatpush1.bf16.msra.mxu0 0
  %547 = vmatprep.subr.bf16.mxu0 0
  %548 = vmatpush1.bf16.msra.mxu0 0
  %549 = vmatprep.subr.bf16.mxu0 0
  %550 = vmatpush1.bf16.msra.mxu0 0
  %551 = vmatprep.subr.bf16.mxu0 0
  %552 = vmatpush1.bf16.msra.mxu0 0
  %553 = vmatprep.subr.bf16.mxu0 0
  %554 = vmatpush1.bf16.msra.mxu0 0
  %555 = vmatprep.mubr.bf16.mxu0 %v460
  %556 = vmatmul.mubr.bf16.gmra.mrb[0].mxu0 %v236
  %v557 = vpop.f32.mrb[0].mxu0
  %v558 = vadd.f32 %v116, %v557
  %v559 = vpop.f32.mrb[0].mxu0
  %v560 = vadd.f32 %v120, %v559
  %v561 = vpop.f32.mrb[0].mxu0
  %v562 = vadd.f32 %v116, %v561
  %v563 = vpop.f32.mrb[0].mxu0
  %v564 = vadd.f32 %v120, %v563
  %565 = vmatprep.mubr.bf16.mxu0 %v463
  %566 = vmatmul.mubr.bf16.gmra.mrb[0].mxu0 %v238
  %v567 = vpop.f32.mrb[0].mxu0
  %v568 = vadd.f32 %v116, %v567
  %v569 = vpop.f32.mrb[0].mxu0
  %v570 = vadd.f32 %v120, %v569
  %v571 = vpop.f32.mrb[0].mxu0
  %v572 = vadd.f32 %v116, %v571
  %v573 = vpop.f32.mrb[0].mxu0
  %v574 = vadd.f32 %v120, %v573
  %575 = vmatprep.mubr.bf16.mxu0 %v466
  %576 = vmatmul.mubr.bf16.gmra.mrb[0].mxu0 %v240
  %v577 = vpop.f32.mrb[0].mxu0
  %v578 = vadd.f32 %v116, %v577
  %v579 = vpop.f32.mrb[0].mxu0
  %v580 = vadd.f32 %v120, %v579
  %v581 = vpop.f32.mrb[0].mxu0
  %v582 = vadd.f32 %v116, %v581
  %v583 = vpop.f32.mrb[0].mxu0
  %v584 = vadd.f32 %v120, %v583
  %585 = vmatprep.mubr.bf16.mxu0 %v469
  %586 = vmatmul.mubr.bf16.gmra.mrb[0].mxu0 %v242
  %v587 = vpop.f32.mrb[0].mxu0
  %v588 = vadd.f32 %v116, %v587
  %v589 = vpop.f32.mrb[0].mxu0
  %v590 = vadd.f32 %v120, %v589
  %v591 = vpop.f32.mrb[0].mxu0
  %v592 = vadd.f32 %v116, %v591
  %v593 = vpop.f32.mrb[0].mxu0
  %v594 = vadd.f32 %v120, %v593
  %595 = vmatprep.mubr.bf16.mxu0 %v472
  %596 = vmatmul.mubr.bf16.gmra.mrb[0].mxu0 %v244
  %v597 = vpop.f32.mrb[0].mxu0
  %v598 = vadd.f32 %v116, %v597
  %v599 = vpop.f32.mrb[0].mxu0
  %v600 = vadd.f32 %v120, %v599
  %v601 = vpop.f32.mrb[0].mxu0
  %v602 = vadd.f32 %v116, %v601
  %v603 = vpop.f32.mrb[0].mxu0
  %v604 = vadd.f32 %v120, %v603
  %605 = vmatprep.mubr.bf16.mxu0 %v475
  %606 = vmatmul.mubr.bf16.gmra.mrb[0].mxu0 %v246
  %v607 = vpop.f32.mrb[0].mxu0
  %v608 = vadd.f32 %v116, %v607
  %v609 = vpop.f32.mrb[0].mxu0
  %v610 = vadd.f32 %v120, %v609
  %v611 = vpop.f32.mrb[0].mxu0
  %v612 = vadd.f32 %v116, %v611
  %v613 = vpop.f32.mrb[0].mxu0
  %v614 = vadd.f32 %v120, %v613
  %615 = vmatprep.mubr.bf16.mxu0 %v478
  %616 = vmatmul.mubr.bf16.gmra.mrb[0].mxu0 %v248
  %v617 = vpop.f32.mrb[0].mxu0
  %v618 = vadd.f32 %v116, %v617
  %v619 = vpop.f32.mrb[0].mxu0
  %v620 = vadd.f32 %v120, %v619
  %v621 = vpop.f32.mrb[0].mxu0
  %v622 = vadd.f32 %v116, %v621
  %v623 = vpop.f32.mrb[0].mxu0
  %v624 = vadd.f32 %v120, %v623
  %625 = vmatprep.mubr.bf16.mxu0 %v481
  %626 = vmatmul.mubr.bf16.gmra.mrb[0].mxu0 %v250
  %v627 = vpop.f32.mrb[0].mxu0
  %v628 = vadd.f32 %v116, %v627
  %v629 = vpop.f32.mrb[0].mxu0
  %v630 = vadd.f32 %v120, %v629
  %v631 = vpop.f32.mrb[0].mxu0
  %v632 = vadd.f32 %v116, %v631
  %v633 = vpop.f32.mrb[0].mxu0
  %v634 = vadd.f32 %v120, %v633
  %635 = vmatprep.mubr.bf16.mxu0 %v484
  %636 = vmatmul.mubr.bf16.gmra.mrb[0].mxu0 %v252
  %v637 = vpop.f32.mrb[0].mxu0
  %v638 = vadd.f32 %v116, %v637
  %v639 = vpop.f32.mrb[0].mxu0
  %v640 = vadd.f32 %v120, %v639
  %v641 = vpop.f32.mrb[0].mxu0
  %v642 = vadd.f32 %v116, %v641
  %v643 = vpop.f32.mrb[0].mxu0
  %v644 = vadd.f32 %v120, %v643
  %645 = vmatprep.mubr.bf16.mxu0 %v487
  %646 = vmatmul.mubr.bf16.gmra.mrb[0].mxu0 %v254
  %v647 = vpop.f32.mrb[0].mxu0
  %v648 = vadd.f32 %v116, %v647
  %v649 = vpop.f32.mrb[0].mxu0
  %v650 = vadd.f32 %v120, %v649
  %v651 = vpop.f32.mrb[0].mxu0
  %v652 = vadd.f32 %v116, %v651
  %v653 = vpop.f32.mrb[0].mxu0
  %v654 = vadd.f32 %v120, %v653
  %655 = vmatprep.mubr.bf16.mxu0 %v490
  %656 = vmatmul.mubr.bf16.gmra.mrb[0].mxu0 %v256
  %v657 = vpop.f32.mrb[0].mxu0
  %v658 = vadd.f32 %v116, %v657
  %v659 = vpop.f32.mrb[0].mxu0
  %v660 = vadd.f32 %v120, %v659
  %v661 = vpop.f32.mrb[0].mxu0
  %v662 = vadd.f32 %v116, %v661
  %v663 = vpop.f32.mrb[0].mxu0
  %v664 = vadd.f32 %v120, %v663
  %665 = vmatprep.mubr.bf16.mxu0 %v493
  %666 = vmatmul.mubr.bf16.gmra.mrb[0].mxu0 %v258
  %v667 = vpop.f32.mrb[0].mxu0
  %v668 = vadd.f32 %v116, %v667
  %v669 = vpop.f32.mrb[0].mxu0
  %v670 = vadd.f32 %v120, %v669
  %v671 = vpop.f32.mrb[0].mxu0
  %v672 = vadd.f32 %v116, %v671
  %v673 = vpop.f32.mrb[0].mxu0
  %v674 = vadd.f32 %v120, %v673
  %675 = vmatprep.mubr.bf16.mxu0 %v496
  %676 = vmatmul.mubr.bf16.gmra.mrb[0].mxu0 %v260
  %v677 = vpop.f32.mrb[0].mxu0
  %v678 = vadd.f32 %v116, %v677
  %v679 = vpop.f32.mrb[0].mxu0
  %v680 = vadd.f32 %v120, %v679
  %v681 = vpop.f32.mrb[0].mxu0
  %v682 = vadd.f32 %v116, %v681
  %v683 = vpop.f32.mrb[0].mxu0
  %v684 = vadd.f32 %v120, %v683
  %685 = vmatprep.mubr.bf16.mxu0 %v499
  %686 = vmatmul.mubr.bf16.gmra.mrb[0].mxu0 %v262
  %v687 = vpop.f32.mrb[0].mxu0
  %v688 = vadd.f32 %v116, %v687
  %v689 = vpop.f32.mrb[0].mxu0
  %v690 = vadd.f32 %v120, %v689
  %v691 = vpop.f32.mrb[0].mxu0
  %v692 = vadd.f32 %v116, %v691
  %v693 = vpop.f32.mrb[0].mxu0
  %v694 = vadd.f32 %v120, %v693
  %695 = vmatprep.mubr.bf16.mxu0 %v502
  %696 = vmatmul.mubr.bf16.gmra.mrb[0].mxu0 %v264
  %v697 = vpop.f32.mrb[0].mxu0
  %v698 = vadd.f32 %v116, %v697
  %v699 = vpop.f32.mrb[0].mxu0
  %v700 = vadd.f32 %v120, %v699
  %v701 = vpop.f32.mrb[0].mxu0
  %v702 = vadd.f32 %v116, %v701
  %v703 = vpop.f32.mrb[0].mxu0
  %v704 = vadd.f32 %v120, %v703
  %705 = vmatprep.mubr.bf16.mxu0 %v505
  %706 = vmatmul.mubr.bf16.gmra.mrb[0].mxu0 %v266
  %v707 = vpop.f32.mrb[0].mxu0
  %v708 = vadd.f32 %v116, %v707
  %v709 = vpop.f32.mrb[0].mxu0
  %v710 = vadd.f32 %v120, %v709
  %v711 = vpop.f32.mrb[0].mxu0
  %v712 = vadd.f32 %v116, %v711
  %v713 = vpop.f32.mrb[0].mxu0
  %v714 = vadd.f32 %v120, %v713
  %715 = vmatprep.mubr.bf16.mxu0 %v508
  %716 = vmatmul.mubr.bf16.gmra.mrb[0].mxu0 %v268
  %v717 = vpop.f32.mrb[0].mxu0
  %v718 = vadd.f32 %v116, %v717
  %v719 = vpop.f32.mrb[0].mxu0
  %v720 = vadd.f32 %v120, %v719
  %v721 = vpop.f32.mrb[0].mxu0
  %v722 = vadd.f32 %v116, %v721
  %v723 = vpop.f32.mrb[0].mxu0
  %v724 = vadd.f32 %v120, %v723
  %725 = vmatprep.mubr.bf16.mxu0 %v511
  %726 = vmatmul.mubr.bf16.gmra.mrb[0].mxu0 %v270
  %v727 = vpop.f32.mrb[0].mxu0
  %v728 = vadd.f32 %v116, %v727
  %v729 = vpop.f32.mrb[0].mxu0
  %v730 = vadd.f32 %v120, %v729
  %v731 = vpop.f32.mrb[0].mxu0
  %v732 = vadd.f32 %v116, %v731
  %v733 = vpop.f32.mrb[0].mxu0
  %v734 = vadd.f32 %v120, %v733
  %735 = vdwg.mxu0
  %736 = vmatprep.subr.bf16.mxu0 0
  %737 = vmatpush1.bf16.msra.mxu0 %v397
  %738 = vmatprep.subr.bf16.mxu0 0
  %739 = vmatpush1.bf16.msra.mxu0 %v400
  %740 = vmatprep.subr.bf16.mxu0 0
  %741 = vmatpush1.bf16.msra.mxu0 %v403
  %742 = vmatprep.subr.bf16.mxu0 0
  %743 = vmatpush1.bf16.msra.mxu0 %v406
  %744 = vmatprep.subr.bf16.mxu0 0
  %745 = vmatpush1.bf16.msra.mxu0 %v409
  %746 = vmatprep.subr.bf16.mxu0 0
  %747 = vmatpush1.bf16.msra.mxu0 %v412
  %748 = vmatprep.subr.bf16.mxu0 0
  %749 = vmatpush1.bf16.msra.mxu0 %v415
  %750 = vmatprep.subr.bf16.mxu0 0
  %751 = vmatpush1.bf16.msra.mxu0 %v418
  %752 = vmatprep.subr.bf16.mxu0 0
  %753 = vmatpush1.bf16.msra.mxu0 %v421
  %754 = vmatprep.subr.bf16.mxu0 0
  %755 = vmatpush1.bf16.msra.mxu0 %v424
  %756 = vmatprep.subr.bf16.mxu0 0
  %757 = vmatpush1.bf16.msra.mxu0 %v521
  %758 = vmatprep.subr.bf16.mxu0 0
  %759 = vmatpush1.bf16.msra.mxu0 0
  %760 = vmatprep.subr.bf16.mxu0 0
  %761 = vmatpush1.bf16.msra.mxu0 0
  %762 = vmatprep.subr.bf16.mxu0 0
  %763 = vmatpush1.bf16.msra.mxu0 0
  %764 = vmatprep.subr.bf16.mxu0 0
  %765 = vmatpush1.bf16.msra.mxu0 0
  %766 = vmatprep.subr.bf16.mxu0 0
  %767 = vmatpush1.bf16.msra.mxu0 0
  %768 = vmatprep.mubr.bf16.mxu0 %v460
  %769 = vmatmul.mubr.bf16.gmra.mrb[0].mxu0 %v236
  %v770 = vpop.f32.mrb[0].mxu0
  %v771 = vadd.f32 %v124, %v770
  %v772 = vpop.f32.mrb[0].mxu0
  %v773 = vpop.f32.mrb[0].mxu0
  %v774 = vadd.f32 %v124, %v773
  %v775 = vpop.f32.mrb[0].mxu0
  %776 = vmatprep.mubr.bf16.mxu0 %v463
  %777 = vmatmul.mubr.bf16.gmra.mrb[0].mxu0 %v238
  %v778 = vpop.f32.mrb[0].mxu0
  %v779 = vadd.f32 %v124, %v778
  %v780 = vpop.f32.mrb[0].mxu0
  %v781 = vpop.f32.mrb[0].mxu0
  %v782 = vadd.f32 %v124, %v781
  %v783 = vpop.f32.mrb[0].mxu0
  %784 = vmatprep.mubr.bf16.mxu0 %v466
  %785 = vmatmul.mubr.bf16.gmra.mrb[0].mxu0 %v240
  %v786 = vpop.f32.mrb[0].mxu0
  %v787 = vadd.f32 %v124, %v786
  %v788 = vpop.f32.mrb[0].mxu0
  %v789 = vpop.f32.mrb[0].mxu0
  %v790 = vadd.f32 %v124, %v789
  %v791 = vpop.f32.mrb[0].mxu0
  %792 = vmatprep.mubr.bf16.mxu0 %v469
  %793 = vmatmul.mubr.bf16.gmra.mrb[0].mxu0 %v242
  %v794 = vpop.f32.mrb[0].mxu0
  %v795 = vadd.f32 %v124, %v794
  %v796 = vpop.f32.mrb[0].mxu0
  %v797 = vpop.f32.mrb[0].mxu0
  %v798 = vadd.f32 %v124, %v797
  %v799 = vpop.f32.mrb[0].mxu0
  %800 = vmatprep.mubr.bf16.mxu0 %v472
  %801 = vmatmul.mubr.bf16.gmra.mrb[0].mxu0 %v244
  %v802 = vpop.f32.mrb[0].mxu0
  %v803 = vadd.f32 %v124, %v802
  %v804 = vpop.f32.mrb[0].mxu0
  %v805 = vpop.f32.mrb[0].mxu0
  %v806 = vadd.f32 %v124, %v805
  %v807 = vpop.f32.mrb[0].mxu0
  %808 = vmatprep.mubr.bf16.mxu0 %v475
  %809 = vmatmul.mubr.bf16.gmra.mrb[0].mxu0 %v246
  %v810 = vpop.f32.mrb[0].mxu0
  %v811 = vadd.f32 %v124, %v810
  %v812 = vpop.f32.mrb[0].mxu0
  %v813 = vpop.f32.mrb[0].mxu0
  %v814 = vadd.f32 %v124, %v813
  %v815 = vpop.f32.mrb[0].mxu0
  %816 = vmatprep.mubr.bf16.mxu0 %v478
  %817 = vmatmul.mubr.bf16.gmra.mrb[0].mxu0 %v248
  %v818 = vpop.f32.mrb[0].mxu0
  %v819 = vadd.f32 %v124, %v818
  %v820 = vpop.f32.mrb[0].mxu0
  %v821 = vpop.f32.mrb[0].mxu0
  %v822 = vadd.f32 %v124, %v821
  %v823 = vpop.f32.mrb[0].mxu0
  %824 = vmatprep.mubr.bf16.mxu0 %v481
  %825 = vmatmul.mubr.bf16.gmra.mrb[0].mxu0 %v250
  %v826 = vpop.f32.mrb[0].mxu0
  %v827 = vadd.f32 %v124, %v826
  %v828 = vpop.f32.mrb[0].mxu0
  %v829 = vpop.f32.mrb[0].mxu0
  %v830 = vadd.f32 %v124, %v829
  %v831 = vpop.f32.mrb[0].mxu0
  %832 = vmatprep.mubr.bf16.mxu0 %v484
  %833 = vmatmul.mubr.bf16.gmra.mrb[0].mxu0 %v252
  %v834 = vpop.f32.mrb[0].mxu0
  %v835 = vadd.f32 %v124, %v834
  %v836 = vpop.f32.mrb[0].mxu0
  %v837 = vpop.f32.mrb[0].mxu0
  %v838 = vadd.f32 %v124, %v837
  %v839 = vpop.f32.mrb[0].mxu0
  %840 = vmatprep.mubr.bf16.mxu0 %v487
  %841 = vmatmul.mubr.bf16.gmra.mrb[0].mxu0 %v254
  %v842 = vpop.f32.mrb[0].mxu0
  %v843 = vadd.f32 %v124, %v842
  %v844 = vpop.f32.mrb[0].mxu0
  %v845 = vpop.f32.mrb[0].mxu0
  %v846 = vadd.f32 %v124, %v845
  %v847 = vpop.f32.mrb[0].mxu0
  %848 = vmatprep.mubr.bf16.mxu0 %v490
  %849 = vmatmul.mubr.bf16.gmra.mrb[0].mxu0 %v256
  %v850 = vpop.f32.mrb[0].mxu0
  %v851 = vadd.f32 %v124, %v850
  %v852 = vpop.f32.mrb[0].mxu0
  %v853 = vpop.f32.mrb[0].mxu0
  %v854 = vadd.f32 %v124, %v853
  %v855 = vpop.f32.mrb[0].mxu0
  %856 = vmatprep.mubr.bf16.mxu0 %v493
  %857 = vmatmul.mubr.bf16.gmra.mrb[0].mxu0 %v258
  %v858 = vpop.f32.mrb[0].mxu0
  %v859 = vadd.f32 %v124, %v858
  %v860 = vpop.f32.mrb[0].mxu0
  %v861 = vpop.f32.mrb[0].mxu0
  %v862 = vadd.f32 %v124, %v861
  %v863 = vpop.f32.mrb[0].mxu0
  %864 = vmatprep.mubr.bf16.mxu0 %v496
  %865 = vmatmul.mubr.bf16.gmra.mrb[0].mxu0 %v260
  %v866 = vpop.f32.mrb[0].mxu0
  %v867 = vadd.f32 %v124, %v866
  %v868 = vpop.f32.mrb[0].mxu0
  %v869 = vpop.f32.mrb[0].mxu0
  %v870 = vadd.f32 %v124, %v869
  %v871 = vpop.f32.mrb[0].mxu0
  %872 = vmatprep.mubr.bf16.mxu0 %v499
  %873 = vmatmul.mubr.bf16.gmra.mrb[0].mxu0 %v262
  %v874 = vpop.f32.mrb[0].mxu0
  %v875 = vadd.f32 %v124, %v874
  %v876 = vpop.f32.mrb[0].mxu0
  %v877 = vpop.f32.mrb[0].mxu0
  %v878 = vadd.f32 %v124, %v877
  %v879 = vpop.f32.mrb[0].mxu0
  %880 = vmatprep.mubr.bf16.mxu0 %v502
  %881 = vmatmul.mubr.bf16.gmra.mrb[0].mxu0 %v264
  %v882 = vpop.f32.mrb[0].mxu0
  %v883 = vadd.f32 %v124, %v882
  %v884 = vpop.f32.mrb[0].mxu0
  %v885 = vpop.f32.mrb[0].mxu0
  %v886 = vadd.f32 %v124, %v885
  %v887 = vpop.f32.mrb[0].mxu0
  %888 = vmatprep.mubr.bf16.mxu0 %v505
  %889 = vmatmul.mubr.bf16.gmra.mrb[0].mxu0 %v266
  %v890 = vpop.f32.mrb[0].mxu0
  %v891 = vadd.f32 %v124, %v890
  %v892 = vpop.f32.mrb[0].mxu0
  %v893 = vpop.f32.mrb[0].mxu0
  %v894 = vadd.f32 %v124, %v893
  %v895 = vpop.f32.mrb[0].mxu0
  %896 = vmatprep.mubr.bf16.mxu0 %v508
  %897 = vmatmul.mubr.bf16.gmra.mrb[0].mxu0 %v268
  %v898 = vpop.f32.mrb[0].mxu0
  %v899 = vadd.f32 %v124, %v898
  %v900 = vpop.f32.mrb[0].mxu0
  %v901 = vpop.f32.mrb[0].mxu0
  %v902 = vadd.f32 %v124, %v901
  %v903 = vpop.f32.mrb[0].mxu0
  %904 = vmatprep.mubr.bf16.mxu0 %v511
  %905 = vmatmul.mubr.bf16.gmra.mrb[0].mxu0 %v270
  %v906 = vpop.f32.mrb[0].mxu0
  %v907 = vadd.f32 %v124, %v906
  %v908 = vpop.f32.mrb[0].mxu0
  %v909 = vpop.f32.mrb[0].mxu0
  %v910 = vadd.f32 %v124, %v909
  %v911 = vpop.f32.mrb[0].mxu0
  %912 = vdwg.mxu0
  %v913 = vmax.f32 %v558, 0.0
  %v914 = vmax.f32 %v560, 0.0
  %v915 = vmax.f32 %v771, 0.0
  %v916 = vmax.f32 %v562, 0.0
  %v917 = vmax.f32 %v564, 0.0
  %v918 = vmax.f32 %v774, 0.0
  %v919 = vmax.f32 %v568, 0.0
  %v920 = vmax.f32 %v570, 0.0
  %v921 = vmax.f32 %v779, 0.0
  %v922 = vmax.f32 %v572, 0.0
  %v923 = vmax.f32 %v574, 0.0
  %v924 = vmax.f32 %v782, 0.0
  %v925 = vmax.f32 %v578, 0.0
  %v926 = vmax.f32 %v580, 0.0
  %v927 = vmax.f32 %v787, 0.0
  %v928 = vmax.f32 %v582, 0.0
  %v929 = vmax.f32 %v584, 0.0
  %v930 = vmax.f32 %v790, 0.0
  %v931 = vmax.f32 %v588, 0.0
  %v932 = vmax.f32 %v590, 0.0
  %v933 = vmax.f32 %v795, 0.0
  %v934 = vmax.f32 %v592, 0.0
  %v935 = vmax.f32 %v594, 0.0
  %v936 = vmax.f32 %v798, 0.0
  %v937 = vmax.f32 %v598, 0.0
  %v938 = vmax.f32 %v600, 0.0
  %v939 = vmax.f32 %v803, 0.0
  %v940 = vmax.f32 %v602, 0.0
  %v941 = vmax.f32 %v604, 0.0
  %v942 = vmax.f32 %v806, 0.0
  %v943 = vmax.f32 %v608, 0.0
  %v944 = vmax.f32 %v610, 0.0
  %v945 = vmax.f32 %v811, 0.0
  %v946 = vmax.f32 %v612, 0.0
  %v947 = vmax.f32 %v614, 0.0
  %v948 = vmax.f32 %v814, 0.0
  %v949 = vmax.f32 %v618, 0.0
  %v950 = vmax.f32 %v620, 0.0
  %v951 = vmax.f32 %v819, 0.0
  %v952 = vmax.f32 %v622, 0.0
  %v953 = vmax.f32 %v624, 0.0
  %v954 = vmax.f32 %v822, 0.0
  %v955 = vmax.f32 %v628, 0.0
  %v956 = vmax.f32 %v630, 0.0
  %v957 = vmax.f32 %v827, 0.0
  %v958 = vmax.f32 %v632, 0.0
  %v959 = vmax.f32 %v634, 0.0
  %v960 = vmax.f32 %v830, 0.0
  %v961 = vmax.f32 %v638, 0.0
  %v962 = vmax.f32 %v640, 0.0
  %v963 = vmax.f32 %v835, 0.0
  %v964 = vmax.f32 %v642, 0.0
  %v965 = vmax.f32 %v644, 0.0
  %v966 = vmax.f32 %v838, 0.0
  %v967 = vmax.f32 %v648, 0.0
  %v968 = vmax.f32 %v650, 0.0
  %v969 = vmax.f32 %v843, 0.0
  %v970 = vmax.f32 %v652, 0.0
  %v971 = vmax.f32 %v654, 0.0
  %v972 = vmax.f32 %v846, 0.0
  %v973 = vmax.f32 %v658, 0.0
  %v974 = vmax.f32 %v660, 0.0
  %v975 = vmax.f32 %v851, 0.0
  %v976 = vmax.f32 %v662, 0.0
  %v977 = vmax.f32 %v664, 0.0
  %v978 = vmax.f32 %v854, 0.0
  %v979 = vmax.f32 %v668, 0.0
  %v980 = vmax.f32 %v670, 0.0
  %v981 = vmax.f32 %v859, 0.0
  %v982 = vmax.f32 %v672, 0.0
  %v983 = vmax.f32 %v674, 0.0
  %v984 = vmax.f32 %v862, 0.0
  %v985 = vmax.f32 %v678, 0.0
  %v986 = vmax.f32 %v680, 0.0
  %v987 = vmax.f32 %v867, 0.0
  %v988 = vmax.f32 %v682, 0.0
  %v989 = vmax.f32 %v684, 0.0
  %v990 = vmax.f32 %v870, 0.0
  %v991 = vmax.f32 %v688, 0.0
  %v992 = vmax.f32 %v690, 0.0
  %v993 = vmax.f32 %v875, 0.0
  %v994 = vmax.f32 %v692, 0.0
  %v995 = vmax.f32 %v694, 0.0
  %v996 = vmax.f32 %v878, 0.0
  %v997 = vmax.f32 %v698, 0.0
  %v998 = vmax.f32 %v700, 0.0
  %v999 = vmax.f32 %v883, 0.0
  %v1000 = vmax.f32 %v702, 0.0
  %v1001 = vmax.f32 %v704, 0.0
  %v1002 = vmax.f32 %v886, 0.0
  %v1003 = vmax.f32 %v708, 0.0
  %v1004 = vmax.f32 %v710, 0.0
  %v1005 = vmax.f32 %v891, 0.0
  %v1006 = vmax.f32 %v712, 0.0
  %v1007 = vmax.f32 %v714, 0.0
  %v1008 = vmax.f32 %v894, 0.0
  %v1009 = vmax.f32 %v718, 0.0
  %v1010 = vmax.f32 %v720, 0.0
  %v1011 = vmax.f32 %v899, 0.0
  %v1012 = vmax.f32 %v722, 0.0
  %v1013 = vmax.f32 %v724, 0.0
  %v1014 = vmax.f32 %v902, 0.0
  %v1015 = vmax.f32 %v728, 0.0
  %v1016 = vmax.f32 %v730, 0.0
  %v1017 = vmax.f32 %v907, 0.0
  %v1018 = vmax.f32 %v732, 0.0
  %v1019 = vmax.f32 %v734, 0.0
  %v1020 = vmax.f32 %v910, 0.0
  %v1021 = vpack.c.bf16 %v916, %v913
  %v1022 = vpack.c.bf16 %v917, %v914
  %v1023 = vpack.c.bf16 %v918, %v915
  %v1024 = vpack.c.bf16 %v922, %v919
  %v1025 = vpack.c.bf16 %v923, %v920
  %v1026 = vpack.c.bf16 %v924, %v921
  %v1027 = vpack.c.bf16 %v928, %v925
  %v1028 = vpack.c.bf16 %v929, %v926
  %v1029 = vpack.c.bf16 %v930, %v927
  %v1030 = vpack.c.bf16 %v934, %v931
  %v1031 = vpack.c.bf16 %v935, %v932
  %v1032 = vpack.c.bf16 %v936, %v933
  %v1033 = vpack.c.bf16 %v940, %v937
  %v1034 = vpack.c.bf16 %v941, %v938
  %v1035 = vpack.c.bf16 %v942, %v939
  %v1036 = vpack.c.bf16 %v946, %v943
  %v1037 = vpack.c.bf16 %v947, %v944
  %v1038 = vpack.c.bf16 %v948, %v945
  %v1039 = vpack.c.bf16 %v952, %v949
  %v1040 = vpack.c.bf16 %v953, %v950
  %v1041 = vpack.c.bf16 %v954, %v951
  %v1042 = vpack.c.bf16 %v958, %v955
  %v1043 = vpack.c.bf16 %v959, %v956
  %v1044 = vpack.c.bf16 %v960, %v957
  %v1045 = vpack.c.bf16 %v964, %v961
  %v1046 = vpack.c.bf16 %v965, %v962
  %v1047 = vpack.c.bf16 %v966, %v963
  %v1048 = vpack.c.bf16 %v970, %v967
  %v1049 = vpack.c.bf16 %v971, %v968
  %v1050 = vpack.c.bf16 %v972, %v969
  %v1051 = vpack.c.bf16 %v976, %v973
  %v1052 = vpack.c.bf16 %v977, %v974
  %v1053 = vpack.c.bf16 %v978, %v975
  %v1054 = vpack.c.bf16 %v982, %v979
  %v1055 = vpack.c.bf16 %v983, %v980
  %v1056 = vpack.c.bf16 %v984, %v981
  %v1057 = vpack.c.bf16 %v988, %v985
  %v1058 = vpack.c.bf16 %v989, %v986
  %v1059 = vpack.c.bf16 %v990, %v987
  %v1060 = vpack.c.bf16 %v994, %v991
  %v1061 = vpack.c.bf16 %v995, %v992
  %v1062 = vpack.c.bf16 %v996, %v993
  %v1063 = vpack.c.bf16 %v1000, %v997
  %v1064 = vpack.c.bf16 %v1001, %v998
  %v1065 = vpack.c.bf16 %v1002, %v999
  %v1066 = vpack.c.bf16 %v1006, %v1003
  %v1067 = vpack.c.bf16 %v1007, %v1004
  %v1068 = vpack.c.bf16 %v1008, %v1005
  %v1069 = vpack.c.bf16 %v1012, %v1009
  %v1070 = vpack.c.bf16 %v1013, %v1010
  %v1071 = vpack.c.bf16 %v1014, %v1011
  %v1072 = vpack.c.bf16 %v1018, %v1015
  %v1073 = vpack.c.bf16 %v1019, %v1016
  %v1074 = vpack.c.bf16 %v1020, %v1017
  %v1075 = vld [vmem:[%s3] sm:$0xf]
  %v1076 = vld [vmem:[%s3 + $0x4] sm:$0xf]
  %v1077 = vld [vmem:[%s3 + $0x8] sm:$0xf]
  %v1078 = vld [vmem:[%s3 + $0xc] sm:$0xf]
  %v1079 = vld [vmem:[%s3 + $0x10] sm:$0xf]
  %v1080 = vld [vmem:[%s3 + $0x14] sm:$0xf]
  %v1081 = vld [vmem:[%s3 + $0x18] sm:$0xf]
  %v1082 = vld [vmem:[%s3 + $0x1c] sm:$0xf]
  %v1083 = vld [vmem:[%s3 + $0x20] sm:$0xf]
  %v1084 = vld [vmem:[%s3 + $0x24] sm:$0xf]
  %v1085 = vld [vmem:[%s3 + $0x28] sm:$0xf]
  %v1086 = vld [vmem:[%s3 + $0x2c] sm:$0xf]
  %v1087 = vld [vmem:[%s3 + $0x30] sm:$0xf]
  %v1088 = vld [vmem:[%s3 + $0x34] sm:$0xf]
  %v1089 = vld [vmem:[%s3 + $0x38] sm:$0xf]
  %v1090 = vld [vmem:[%s3 + $0x3c] sm:$0xf]
  %v1091 = vld [vmem:[%s3 + $0x40] sm:$0xf]
  %v1092 = vld [vmem:[%s3 + $0x44] sm:$0xf]
  %v1093 = vld [vmem:[%s3 + $0x48] sm:$0xf]
  %v1094 = vld [vmem:[%s3 + $0x4c] sm:$0xf]
  %v1095 = vld [vmem:[%s3 + $0x50] sm:$0xf]
  %v1096 = vld [vmem:[%s3 + $0x54] sm:$0xf]
  %v1097 = vld [vmem:[%s3 + $0x58] sm:$0xf]
  %v1098 = vld [vmem:[%s3 + $0x5c] sm:$0xf]
  %v1099 = vld [vmem:[%s3 + $0x60] sm:$0xf]
  %v1100 = vld [vmem:[%s3 + $0x64] sm:$0xf]
  %v1101 = vld [vmem:[%s3 + $0x68] sm:$0xf]
  %v1102 = vld [vmem:[%s3 + $0x6c] sm:$0xf]
  %v1103 = vld [vmem:[%s3 + $0x70] sm:$0xf]
  %v1104 = vld [vmem:[%s3 + $0x74] sm:$0xf]
  %v1105 = vld [vmem:[%s3 + $0x78] sm:$0xf]
  %v1106 = vld [vmem:[%s3 + $0x7c] sm:$0xf]
  %v1107 = vld [vmem:[%s3 + $0x80] sm:$0xf]
  %v1108 = vld [vmem:[%s3 + $0x84] sm:$0xf]
  %v1109 = vld [vmem:[%s3 + $0x88] sm:$0xf]
  %v1110 = vld [vmem:[%s3 + $0x8c] sm:$0xf]
  %v1111 = vld [vmem:[%s4] sm:$0x1]
  %v1113 = vlaneseq
  %v1114 = vshrl.u32 %v1113, 7
  %v1115 = vsub.s32 0, %v1114
  %v1116 = vrot.slane %v1111, %v1115
  %v1154 = vunpack.c.l.b16 %v1075
  %v1155 = vunpack.c.l.b16 %v1076
  %v1156 = vunpack.c.l.b16 %v1077
  %v1157 = vunpack.c.l.b16 %v1078
  %v1158 = vunpack.c.l.b16 %v1079
  %v1159 = vunpack.c.l.b16 %v1080
  %v1160 = vunpack.c.l.b16 %v1081
  %v1161 = vunpack.c.l.b16 %v1082
  %v1162 = vunpack.c.l.b16 %v1083
  %v1163 = vunpack.c.l.b16 %v1084
  %v1164 = vunpack.c.l.b16 %v1085
  %v1165 = vunpack.c.l.b16 %v1086
  %v1166 = vunpack.c.l.b16 %v1087
  %v1167 = vunpack.c.l.b16 %v1088
  %v1168 = vunpack.c.l.b16 %v1089
  %v1169 = vunpack.c.l.b16 %v1090
  %v1170 = vunpack.c.l.b16 %v1091
  %v1171 = vunpack.c.l.b16 %v1092
  %v1172 = vunpack.c.l.b16 %v1093
  %v1173 = vunpack.c.l.b16 %v1094
  %v1174 = vunpack.c.l.b16 %v1095
  %v1175 = vunpack.c.l.b16 %v1096
  %v1176 = vunpack.c.l.b16 %v1097
  %v1177 = vunpack.c.l.b16 %v1098
  %v1178 = vunpack.c.l.b16 %v1099
  %v1179 = vunpack.c.l.b16 %v1100
  %v1180 = vunpack.c.l.b16 %v1101
  %v1181 = vunpack.c.l.b16 %v1102
  %v1182 = vunpack.c.l.b16 %v1103
  %v1183 = vunpack.c.l.b16 %v1104
  %v1184 = vunpack.c.l.b16 %v1105
  %v1185 = vunpack.c.l.b16 %v1106
  %v1186 = vunpack.c.l.b16 %v1107
  %v1187 = vunpack.c.l.b16 %v1108
  %v1188 = vunpack.c.l.b16 %v1109
  %v1189 = vunpack.c.l.b16 %v1110
  %v1190 = vpack.c.b16 %v1155, %v1154
  %v1191 = vpack.c.b16 %v1157, %v1156
  %v1192 = vpack.c.b16 %v1159, %v1158
  %v1193 = vpack.c.b16 %v1161, %v1160
  %v1194 = vpack.c.b16 %v1163, %v1162
  %v1195 = vpack.c.b16 %v1165, %v1164
  %v1196 = vpack.c.b16 %v1167, %v1166
  %v1197 = vpack.c.b16 %v1169, %v1168
  %v1198 = vpack.c.b16 %v1171, %v1170
  %v1199 = vpack.c.b16 %v1173, %v1172
  %v1200 = vpack.c.b16 %v1175, %v1174
  %v1201 = vpack.c.b16 %v1177, %v1176
  %v1202 = vpack.c.b16 %v1179, %v1178
  %v1203 = vpack.c.b16 %v1181, %v1180
  %v1204 = vpack.c.b16 %v1183, %v1182
  %v1205 = vpack.c.b16 %v1185, %v1184
  %v1206 = vpack.c.b16 %v1187, %v1186
  %v1207 = vpack.c.b16 %v1189, %v1188
  %vm1226 = vcmask 261120
  %v1228 = vsel %vm1226, %v1023, 0
  %v1231 = vsel %vm1226, %v1026, 0
  %v1234 = vsel %vm1226, %v1029, 0
  %v1237 = vsel %vm1226, %v1032, 0
  %v1240 = vsel %vm1226, %v1035, 0
  %v1243 = vsel %vm1226, %v1038, 0
  %v1246 = vsel %vm1226, %v1041, 0
  %v1249 = vsel %vm1226, %v1044, 0
  %v1252 = vsel %vm1226, %v1047, 0
  %v1255 = vsel %vm1226, %v1050, 0
  %v1258 = vsel %vm1226, %v1053, 0
  %v1261 = vsel %vm1226, %v1056, 0
  %v1264 = vsel %vm1226, %v1059, 0
  %v1267 = vsel %vm1226, %v1062, 0
  %v1270 = vsel %vm1226, %v1065, 0
  %v1273 = vsel %vm1226, %v1068, 0
  %v1276 = vsel %vm1226, %v1071, 0
  %v1279 = vsel %vm1226, %v1074, 0
  %1281 = vmatprep.subr.bf16.mxu0 0
  %1282 = vmatpush1.bf16.msra.mxu0 %v1190
  %1283 = vmatprep.subr.bf16.mxu0 0
  %1284 = vmatpush1.bf16.msra.mxu0 %v1191
  %1285 = vmatprep.subr.bf16.mxu0 0
  %1286 = vmatpush1.bf16.msra.mxu0 %v1192
  %1287 = vmatprep.subr.bf16.mxu0 0
  %1288 = vmatpush1.bf16.msra.mxu0 %v1193
  %1289 = vmatprep.subr.bf16.mxu0 0
  %1290 = vmatpush1.bf16.msra.mxu0 %v1194
  %1291 = vmatprep.subr.bf16.mxu0 0
  %1292 = vmatpush1.bf16.msra.mxu0 %v1195
  %1293 = vmatprep.subr.bf16.mxu0 0
  %1294 = vmatpush1.bf16.msra.mxu0 %v1196
  %1295 = vmatprep.subr.bf16.mxu0 0
  %1296 = vmatpush1.bf16.msra.mxu0 %v1197
  %1297 = vmatprep.subr.bf16.mxu0 0
  %1298 = vmatpush1.bf16.msra.mxu0 %v1198
  %1299 = vmatprep.subr.bf16.mxu0 0
  %1300 = vmatpush1.bf16.msra.mxu0 %v1199
  %1301 = vmatprep.subr.bf16.mxu0 0
  %1302 = vmatpush1.bf16.msra.mxu0 %v1200
  %1303 = vmatprep.subr.bf16.mxu0 0
  %1304 = vmatpush1.bf16.msra.mxu0 %v1201
  %1305 = vmatprep.subr.bf16.mxu0 0
  %1306 = vmatpush1.bf16.msra.mxu0 %v1202
  %1307 = vmatprep.subr.bf16.mxu0 0
  %1308 = vmatpush1.bf16.msra.mxu0 %v1203
  %1309 = vmatprep.subr.bf16.mxu0 0
  %1310 = vmatpush1.bf16.msra.mxu0 %v1204
  %1311 = vmatprep.subr.bf16.mxu0 0
  %1312 = vmatpush1.bf16.msra.mxu0 %v1205
  %1313 = vmatprep.mubr.bf16.mxu0 %v1022
  %1314 = vmatmul.mubr.bf16.gmra.mrb[0].mxu0 %v1021
  %v1315 = vpop.f32.mrb[0].mxu0
  %v1316 = vadd.f32 %v1116, %v1315
  %v1317 = vpop.f32.mrb[0].mxu0
  %v1318 = vpop.f32.mrb[0].mxu0
  %v1319 = vadd.f32 %v1116, %v1318
  %v1320 = vpop.f32.mrb[0].mxu0
  %1321 = vmatprep.mubr.bf16.mxu0 %v1025
  %1322 = vmatmul.mubr.bf16.gmra.mrb[0].mxu0 %v1024
  %v1323 = vpop.f32.mrb[0].mxu0
  %v1324 = vadd.f32 %v1116, %v1323
  %v1325 = vpop.f32.mrb[0].mxu0
  %v1326 = vpop.f32.mrb[0].mxu0
  %v1327 = vadd.f32 %v1116, %v1326
  %v1328 = vpop.f32.mrb[0].mxu0
  %1329 = vmatprep.mubr.bf16.mxu0 %v1028
  %1330 = vmatmul.mubr.bf16.gmra.mrb[0].mxu0 %v1027
  %v1331 = vpop.f32.mrb[0].mxu0
  %v1332 = vadd.f32 %v1116, %v1331
  %v1333 = vpop.f32.mrb[0].mxu0
  %v1334 = vpop.f32.mrb[0].mxu0
  %v1335 = vadd.f32 %v1116, %v1334
  %v1336 = vpop.f32.mrb[0].mxu0
  %1337 = vmatprep.mubr.bf16.mxu0 %v1031
  %1338 = vmatmul.mubr.bf16.gmra.mrb[0].mxu0 %v1030
  %v1339 = vpop.f32.mrb[0].mxu0
  %v1340 = vadd.f32 %v1116, %v1339
  %v1341 = vpop.f32.mrb[0].mxu0
  %v1342 = vpop.f32.mrb[0].mxu0
  %v1343 = vadd.f32 %v1116, %v1342
  %v1344 = vpop.f32.mrb[0].mxu0
  %1345 = vmatprep.mubr.bf16.mxu0 %v1034
  %1346 = vmatmul.mubr.bf16.gmra.mrb[0].mxu0 %v1033
  %v1347 = vpop.f32.mrb[0].mxu0
  %v1348 = vadd.f32 %v1116, %v1347
  %v1349 = vpop.f32.mrb[0].mxu0
  %v1350 = vpop.f32.mrb[0].mxu0
  %v1351 = vadd.f32 %v1116, %v1350
  %v1352 = vpop.f32.mrb[0].mxu0
  %1353 = vmatprep.mubr.bf16.mxu0 %v1037
  %1354 = vmatmul.mubr.bf16.gmra.mrb[0].mxu0 %v1036
  %v1355 = vpop.f32.mrb[0].mxu0
  %v1356 = vadd.f32 %v1116, %v1355
  %v1357 = vpop.f32.mrb[0].mxu0
  %v1358 = vpop.f32.mrb[0].mxu0
  %v1359 = vadd.f32 %v1116, %v1358
  %v1360 = vpop.f32.mrb[0].mxu0
  %1361 = vmatprep.mubr.bf16.mxu0 %v1040
  %1362 = vmatmul.mubr.bf16.gmra.mrb[0].mxu0 %v1039
  %v1363 = vpop.f32.mrb[0].mxu0
  %v1364 = vadd.f32 %v1116, %v1363
  %v1365 = vpop.f32.mrb[0].mxu0
  %v1366 = vpop.f32.mrb[0].mxu0
  %v1367 = vadd.f32 %v1116, %v1366
  %v1368 = vpop.f32.mrb[0].mxu0
  %1369 = vmatprep.mubr.bf16.mxu0 %v1043
  %1370 = vmatmul.mubr.bf16.gmra.mrb[0].mxu0 %v1042
  %v1371 = vpop.f32.mrb[0].mxu0
  %v1372 = vadd.f32 %v1116, %v1371
  %v1373 = vpop.f32.mrb[0].mxu0
  %v1374 = vpop.f32.mrb[0].mxu0
  %v1375 = vadd.f32 %v1116, %v1374
  %v1376 = vpop.f32.mrb[0].mxu0
  %1377 = vmatprep.mubr.bf16.mxu0 %v1046
  %1378 = vmatmul.mubr.bf16.gmra.mrb[0].mxu0 %v1045
  %v1379 = vpop.f32.mrb[0].mxu0
  %v1380 = vadd.f32 %v1116, %v1379
  %v1381 = vpop.f32.mrb[0].mxu0
  %v1382 = vpop.f32.mrb[0].mxu0
  %v1383 = vadd.f32 %v1116, %v1382
  %v1384 = vpop.f32.mrb[0].mxu0
  %1385 = vmatprep.mubr.bf16.mxu0 %v1049
  %1386 = vmatmul.mubr.bf16.gmra.mrb[0].mxu0 %v1048
  %v1387 = vpop.f32.mrb[0].mxu0
  %v1388 = vadd.f32 %v1116, %v1387
  %v1389 = vpop.f32.mrb[0].mxu0
  %v1390 = vpop.f32.mrb[0].mxu0
  %v1391 = vadd.f32 %v1116, %v1390
  %v1392 = vpop.f32.mrb[0].mxu0
  %1393 = vmatprep.mubr.bf16.mxu0 %v1052
  %1394 = vmatmul.mubr.bf16.gmra.mrb[0].mxu0 %v1051
  %v1395 = vpop.f32.mrb[0].mxu0
  %v1396 = vadd.f32 %v1116, %v1395
  %v1397 = vpop.f32.mrb[0].mxu0
  %v1398 = vpop.f32.mrb[0].mxu0
  %v1399 = vadd.f32 %v1116, %v1398
  %v1400 = vpop.f32.mrb[0].mxu0
  %1401 = vmatprep.mubr.bf16.mxu0 %v1055
  %1402 = vmatmul.mubr.bf16.gmra.mrb[0].mxu0 %v1054
  %v1403 = vpop.f32.mrb[0].mxu0
  %v1404 = vadd.f32 %v1116, %v1403
  %v1405 = vpop.f32.mrb[0].mxu0
  %v1406 = vpop.f32.mrb[0].mxu0
  %v1407 = vadd.f32 %v1116, %v1406
  %v1408 = vpop.f32.mrb[0].mxu0
  %1409 = vmatprep.mubr.bf16.mxu0 %v1058
  %1410 = vmatmul.mubr.bf16.gmra.mrb[0].mxu0 %v1057
  %v1411 = vpop.f32.mrb[0].mxu0
  %v1412 = vadd.f32 %v1116, %v1411
  %v1413 = vpop.f32.mrb[0].mxu0
  %v1414 = vpop.f32.mrb[0].mxu0
  %v1415 = vadd.f32 %v1116, %v1414
  %v1416 = vpop.f32.mrb[0].mxu0
  %1417 = vmatprep.mubr.bf16.mxu0 %v1061
  %1418 = vmatmul.mubr.bf16.gmra.mrb[0].mxu0 %v1060
  %v1419 = vpop.f32.mrb[0].mxu0
  %v1420 = vadd.f32 %v1116, %v1419
  %v1421 = vpop.f32.mrb[0].mxu0
  %v1422 = vpop.f32.mrb[0].mxu0
  %v1423 = vadd.f32 %v1116, %v1422
  %v1424 = vpop.f32.mrb[0].mxu0
  %1425 = vmatprep.mubr.bf16.mxu0 %v1064
  %1426 = vmatmul.mubr.bf16.gmra.mrb[0].mxu0 %v1063
  %v1427 = vpop.f32.mrb[0].mxu0
  %v1428 = vadd.f32 %v1116, %v1427
  %v1429 = vpop.f32.mrb[0].mxu0
  %v1430 = vpop.f32.mrb[0].mxu0
  %v1431 = vadd.f32 %v1116, %v1430
  %v1432 = vpop.f32.mrb[0].mxu0
  %1433 = vmatprep.mubr.bf16.mxu0 %v1067
  %1434 = vmatmul.mubr.bf16.gmra.mrb[0].mxu0 %v1066
  %v1435 = vpop.f32.mrb[0].mxu0
  %v1436 = vadd.f32 %v1116, %v1435
  %v1437 = vpop.f32.mrb[0].mxu0
  %v1438 = vpop.f32.mrb[0].mxu0
  %v1439 = vadd.f32 %v1116, %v1438
  %v1440 = vpop.f32.mrb[0].mxu0
  %1441 = vmatprep.mubr.bf16.mxu0 %v1070
  %1442 = vmatmul.mubr.bf16.gmra.mrb[0].mxu0 %v1069
  %v1443 = vpop.f32.mrb[0].mxu0
  %v1444 = vadd.f32 %v1116, %v1443
  %v1445 = vpop.f32.mrb[0].mxu0
  %v1446 = vpop.f32.mrb[0].mxu0
  %v1447 = vadd.f32 %v1116, %v1446
  %v1448 = vpop.f32.mrb[0].mxu0
  %1449 = vmatprep.mubr.bf16.mxu0 %v1073
  %1450 = vmatmul.mubr.bf16.gmra.mrb[0].mxu0 %v1072
  %v1451 = vpop.f32.mrb[0].mxu0
  %v1452 = vadd.f32 %v1116, %v1451
  %v1453 = vpop.f32.mrb[0].mxu0
  %v1454 = vpop.f32.mrb[0].mxu0
  %v1455 = vadd.f32 %v1116, %v1454
  %v1456 = vpop.f32.mrb[0].mxu0
  %1457 = vdwg.mxu0
  %1458 = vmatprep.subr.bf16.mxu0 0
  %1459 = vmatpush1.bf16.msra.mxu0 %v1206
  %1460 = vmatprep.subr.bf16.mxu0 0
  %1461 = vmatpush1.bf16.msra.mxu0 %v1207
  %1462 = vmatprep.subr.bf16.mxu0 0
  %1463 = vmatpush1.bf16.msra.mxu0 0
  %1464 = vmatprep.subr.bf16.mxu0 0
  %1465 = vmatpush1.bf16.msra.mxu0 0
  %1466 = vmatprep.subr.bf16.mxu0 0
  %1467 = vmatpush1.bf16.msra.mxu0 0
  %1468 = vmatprep.subr.bf16.mxu0 0
  %1469 = vmatpush1.bf16.msra.mxu0 0
  %1470 = vmatprep.subr.bf16.mxu0 0
  %1471 = vmatpush1.bf16.msra.mxu0 0
  %1472 = vmatprep.subr.bf16.mxu0 0
  %1473 = vmatpush1.bf16.msra.mxu0 0
  %1474 = vmatprep.subr.bf16.mxu0 0
  %1475 = vmatpush1.bf16.msra.mxu0 0
  %1476 = vmatprep.subr.bf16.mxu0 0
  %1477 = vmatpush1.bf16.msra.mxu0 0
  %1478 = vmatprep.subr.bf16.mxu0 0
  %1479 = vmatpush1.bf16.msra.mxu0 0
  %1480 = vmatprep.subr.bf16.mxu0 0
  %1481 = vmatpush1.bf16.msra.mxu0 0
  %1482 = vmatprep.subr.bf16.mxu0 0
  %1483 = vmatpush1.bf16.msra.mxu0 0
  %1484 = vmatprep.subr.bf16.mxu0 0
  %1485 = vmatpush1.bf16.msra.mxu0 0
  %1486 = vmatprep.subr.bf16.mxu0 0
  %1487 = vmatpush1.bf16.msra.mxu0 0
  %1488 = vmatprep.subr.bf16.mxu0 0
  %1489 = vmatpush1.bf16.msra.mxu0 0
  %1490 = vmatprep.mubr.bf16.mxu0 0
  %1491 = vmatmul.mubr.bf16.gmra.mrb[0].mxu0 %v1228
  %v1492 = vpop.f32.mrb[0].mxu0
  %v1493 = vadd.f32 %v1316, %v1492
  %v1494 = vpop.f32.mrb[0].mxu0
  %v1495 = vpop.f32.mrb[0].mxu0
  %v1496 = vadd.f32 %v1319, %v1495
  %v1497 = vpop.f32.mrb[0].mxu0
  %1498 = vmatprep.mubr.bf16.mxu0 0
  %1499 = vmatmul.mubr.bf16.gmra.mrb[0].mxu0 %v1231
  %v1500 = vpop.f32.mrb[0].mxu0
  %v1501 = vadd.f32 %v1324, %v1500
  %v1502 = vpop.f32.mrb[0].mxu0
  %v1503 = vpop.f32.mrb[0].mxu0
  %v1504 = vadd.f32 %v1327, %v1503
  %v1505 = vpop.f32.mrb[0].mxu0
  %1506 = vmatprep.mubr.bf16.mxu0 0
  %1507 = vmatmul.mubr.bf16.gmra.mrb[0].mxu0 %v1234
  %v1508 = vpop.f32.mrb[0].mxu0
  %v1509 = vadd.f32 %v1332, %v1508
  %v1510 = vpop.f32.mrb[0].mxu0
  %v1511 = vpop.f32.mrb[0].mxu0
  %v1512 = vadd.f32 %v1335, %v1511
  %v1513 = vpop.f32.mrb[0].mxu0
  %1514 = vmatprep.mubr.bf16.mxu0 0
  %1515 = vmatmul.mubr.bf16.gmra.mrb[0].mxu0 %v1237
  %v1516 = vpop.f32.mrb[0].mxu0
  %v1517 = vadd.f32 %v1340, %v1516
  %v1518 = vpop.f32.mrb[0].mxu0
  %v1519 = vpop.f32.mrb[0].mxu0
  %v1520 = vadd.f32 %v1343, %v1519
  %v1521 = vpop.f32.mrb[0].mxu0
  %1522 = vmatprep.mubr.bf16.mxu0 0
  %1523 = vmatmul.mubr.bf16.gmra.mrb[0].mxu0 %v1240
  %v1524 = vpop.f32.mrb[0].mxu0
  %v1525 = vadd.f32 %v1348, %v1524
  %v1526 = vpop.f32.mrb[0].mxu0
  %v1527 = vpop.f32.mrb[0].mxu0
  %v1528 = vadd.f32 %v1351, %v1527
  %v1529 = vpop.f32.mrb[0].mxu0
  %1530 = vmatprep.mubr.bf16.mxu0 0
  %1531 = vmatmul.mubr.bf16.gmra.mrb[0].mxu0 %v1243
  %v1532 = vpop.f32.mrb[0].mxu0
  %v1533 = vadd.f32 %v1356, %v1532
  %v1534 = vpop.f32.mrb[0].mxu0
  %v1535 = vpop.f32.mrb[0].mxu0
  %v1536 = vadd.f32 %v1359, %v1535
  %v1537 = vpop.f32.mrb[0].mxu0
  %1538 = vmatprep.mubr.bf16.mxu0 0
  %1539 = vmatmul.mubr.bf16.gmra.mrb[0].mxu0 %v1246
  %v1540 = vpop.f32.mrb[0].mxu0
  %v1541 = vadd.f32 %v1364, %v1540
  %v1542 = vpop.f32.mrb[0].mxu0
  %v1543 = vpop.f32.mrb[0].mxu0
  %v1544 = vadd.f32 %v1367, %v1543
  %v1545 = vpop.f32.mrb[0].mxu0
  %1546 = vmatprep.mubr.bf16.mxu0 0
  %1547 = vmatmul.mubr.bf16.gmra.mrb[0].mxu0 %v1249
  %v1548 = vpop.f32.mrb[0].mxu0
  %v1549 = vadd.f32 %v1372, %v1548
  %v1550 = vpop.f32.mrb[0].mxu0
  %v1551 = vpop.f32.mrb[0].mxu0
  %v1552 = vadd.f32 %v1375, %v1551
  %v1553 = vpop.f32.mrb[0].mxu0
  %1554 = vmatprep.mubr.bf16.mxu0 0
  %1555 = vmatmul.mubr.bf16.gmra.mrb[0].mxu0 %v1252
  %v1556 = vpop.f32.mrb[0].mxu0
  %v1557 = vadd.f32 %v1380, %v1556
  %v1558 = vpop.f32.mrb[0].mxu0
  %v1559 = vpop.f32.mrb[0].mxu0
  %v1560 = vadd.f32 %v1383, %v1559
  %v1561 = vpop.f32.mrb[0].mxu0
  %1562 = vmatprep.mubr.bf16.mxu0 0
  %1563 = vmatmul.mubr.bf16.gmra.mrb[0].mxu0 %v1255
  %v1564 = vpop.f32.mrb[0].mxu0
  %v1565 = vadd.f32 %v1388, %v1564
  %v1566 = vpop.f32.mrb[0].mxu0
  %v1567 = vpop.f32.mrb[0].mxu0
  %v1568 = vadd.f32 %v1391, %v1567
  %v1569 = vpop.f32.mrb[0].mxu0
  %1570 = vmatprep.mubr.bf16.mxu0 0
  %1571 = vmatmul.mubr.bf16.gmra.mrb[0].mxu0 %v1258
  %v1572 = vpop.f32.mrb[0].mxu0
  %v1573 = vadd.f32 %v1396, %v1572
  %v1574 = vpop.f32.mrb[0].mxu0
  %v1575 = vpop.f32.mrb[0].mxu0
  %v1576 = vadd.f32 %v1399, %v1575
  %v1577 = vpop.f32.mrb[0].mxu0
  %1578 = vmatprep.mubr.bf16.mxu0 0
  %1579 = vmatmul.mubr.bf16.gmra.mrb[0].mxu0 %v1261
  %v1580 = vpop.f32.mrb[0].mxu0
  %v1581 = vadd.f32 %v1404, %v1580
  %v1582 = vpop.f32.mrb[0].mxu0
  %v1583 = vpop.f32.mrb[0].mxu0
  %v1584 = vadd.f32 %v1407, %v1583
  %v1585 = vpop.f32.mrb[0].mxu0
  %1586 = vmatprep.mubr.bf16.mxu0 0
  %1587 = vmatmul.mubr.bf16.gmra.mrb[0].mxu0 %v1264
  %v1588 = vpop.f32.mrb[0].mxu0
  %v1589 = vadd.f32 %v1412, %v1588
  %v1590 = vpop.f32.mrb[0].mxu0
  %v1591 = vpop.f32.mrb[0].mxu0
  %v1592 = vadd.f32 %v1415, %v1591
  %v1593 = vpop.f32.mrb[0].mxu0
  %1594 = vmatprep.mubr.bf16.mxu0 0
  %1595 = vmatmul.mubr.bf16.gmra.mrb[0].mxu0 %v1267
  %v1596 = vpop.f32.mrb[0].mxu0
  %v1597 = vadd.f32 %v1420, %v1596
  %v1598 = vpop.f32.mrb[0].mxu0
  %v1599 = vpop.f32.mrb[0].mxu0
  %v1600 = vadd.f32 %v1423, %v1599
  %v1601 = vpop.f32.mrb[0].mxu0
  %1602 = vmatprep.mubr.bf16.mxu0 0
  %1603 = vmatmul.mubr.bf16.gmra.mrb[0].mxu0 %v1270
  %v1604 = vpop.f32.mrb[0].mxu0
  %v1605 = vadd.f32 %v1428, %v1604
  %v1606 = vpop.f32.mrb[0].mxu0
  %v1607 = vpop.f32.mrb[0].mxu0
  %v1608 = vadd.f32 %v1431, %v1607
  %v1609 = vpop.f32.mrb[0].mxu0
  %1610 = vmatprep.mubr.bf16.mxu0 0
  %1611 = vmatmul.mubr.bf16.gmra.mrb[0].mxu0 %v1273
  %v1612 = vpop.f32.mrb[0].mxu0
  %v1613 = vadd.f32 %v1436, %v1612
  %v1614 = vpop.f32.mrb[0].mxu0
  %v1615 = vpop.f32.mrb[0].mxu0
  %v1616 = vadd.f32 %v1439, %v1615
  %v1617 = vpop.f32.mrb[0].mxu0
  %1618 = vmatprep.mubr.bf16.mxu0 0
  %1619 = vmatmul.mubr.bf16.gmra.mrb[0].mxu0 %v1276
  %v1620 = vpop.f32.mrb[0].mxu0
  %v1621 = vadd.f32 %v1444, %v1620
  %v1622 = vpop.f32.mrb[0].mxu0
  %v1623 = vpop.f32.mrb[0].mxu0
  %v1624 = vadd.f32 %v1447, %v1623
  %v1625 = vpop.f32.mrb[0].mxu0
  %1626 = vmatprep.mubr.bf16.mxu0 0
  %1627 = vmatmul.mubr.bf16.gmra.mrb[0].mxu0 %v1279
  %v1628 = vpop.f32.mrb[0].mxu0
  %v1629 = vadd.f32 %v1452, %v1628
  %v1630 = vpop.f32.mrb[0].mxu0
  %v1631 = vpop.f32.mrb[0].mxu0
  %v1632 = vadd.f32 %v1455, %v1631
  %v1633 = vpop.f32.mrb[0].mxu0
  %1634 = vdwg.mxu0
  %v1635 = vmax.f32 %v1493, 0.0
  %v1636 = vmax.f32 %v1496, 0.0
  %v1637 = vmax.f32 %v1501, 0.0
  %v1638 = vmax.f32 %v1504, 0.0
  %v1639 = vmax.f32 %v1509, 0.0
  %v1640 = vmax.f32 %v1512, 0.0
  %v1641 = vmax.f32 %v1517, 0.0
  %v1642 = vmax.f32 %v1520, 0.0
  %v1643 = vmax.f32 %v1525, 0.0
  %v1644 = vmax.f32 %v1528, 0.0
  %v1645 = vmax.f32 %v1533, 0.0
  %v1646 = vmax.f32 %v1536, 0.0
  %v1647 = vmax.f32 %v1541, 0.0
  %v1648 = vmax.f32 %v1544, 0.0
  %v1649 = vmax.f32 %v1549, 0.0
  %v1650 = vmax.f32 %v1552, 0.0
  %v1651 = vmax.f32 %v1557, 0.0
  %v1652 = vmax.f32 %v1560, 0.0
  %v1653 = vmax.f32 %v1565, 0.0
  %v1654 = vmax.f32 %v1568, 0.0
  %v1655 = vmax.f32 %v1573, 0.0
  %v1656 = vmax.f32 %v1576, 0.0
  %v1657 = vmax.f32 %v1581, 0.0
  %v1658 = vmax.f32 %v1584, 0.0
  %v1659 = vmax.f32 %v1589, 0.0
  %v1660 = vmax.f32 %v1592, 0.0
  %v1661 = vmax.f32 %v1597, 0.0
  %v1662 = vmax.f32 %v1600, 0.0
  %v1663 = vmax.f32 %v1605, 0.0
  %v1664 = vmax.f32 %v1608, 0.0
  %v1665 = vmax.f32 %v1613, 0.0
  %v1666 = vmax.f32 %v1616, 0.0
  %v1667 = vmax.f32 %v1621, 0.0
  %v1668 = vmax.f32 %v1624, 0.0
  %v1669 = vmax.f32 %v1629, 0.0
  %v1670 = vmax.f32 %v1632, 0.0
  %v1671 = vmax.f32 %v1635, %v1644
  %v1672 = vmax.f32 %v1636, %v1645
  %v1673 = vmax.f32 %v1637, %v1646
  %v1674 = vmax.f32 %v1638, %v1647
  %v1675 = vmax.f32 %v1639, %v1648
  %v1676 = vmax.f32 %v1640, %v1649
  %v1677 = vmax.f32 %v1641, %v1650
  %v1678 = vmax.f32 %v1642, %v1651
  %v1679 = vmax.f32 %v1643, %v1652
  %v1680 = vmax.f32 %v1653, %v1662
  %v1681 = vmax.f32 %v1654, %v1663
  %v1682 = vmax.f32 %v1655, %v1664
  %v1683 = vmax.f32 %v1656, %v1665
  %v1684 = vmax.f32 %v1657, %v1666
  %v1685 = vmax.f32 %v1658, %v1667
  %v1686 = vmax.f32 %v1659, %v1668
  %v1687 = vmax.f32 %v1660, %v1669
  %v1688 = vmax.f32 %v1661, %v1670
  %v1689 = vmax.f32 %v1671, %v1680
  %v1690 = vmax.f32 %v1672, %v1681
  %v1691 = vmax.f32 %v1673, %v1682
  %v1692 = vmax.f32 %v1674, %v1683
  %v1693 = vmax.f32 %v1675, %v1684
  %v1694 = vmax.f32 %v1676, %v1685
  %v1695 = vmax.f32 %v1677, %v1686
  %v1696 = vmax.f32 %v1678, %v1687
  %v1697 = vmax.f32 %v1679, %v1688
  %1699 = vrot.lane.b32.xlu0 %v1690, 64
  %v1700 = vpop.permute.xlu0 %1699
  %1703 = vrot.lane.b32.xlu0 %v1692, 64
  %v1704 = vpop.permute.xlu0 %1703
  %1707 = vrot.lane.b32.xlu0 %v1694, 64
  %v1708 = vpop.permute.xlu0 %1707
  %1711 = vrot.lane.b32.xlu0 %v1696, 64
  %v1712 = vpop.permute.xlu0 %1711
  %vm1714 = vcmask 523264
  %v1715 = vsel %vm1714, %v1689, %v1700
  %v1716 = vsel %vm1714, %v1691, %v1704
  %v1717 = vsel %vm1714, %v1693, %v1708
  %v1718 = vsel %vm1714, %v1695, %v1712
  %v1719 = vpack.c.bf16 %v1715, %v1715
  %v1720 = vpack.c.bf16 %v1716, %v1716
  %v1721 = vpack.c.bf16 %v1717, %v1717
  %v1722 = vpack.c.bf16 %v1718, %v1718
  %v1723 = vpack.c.bf16 %v1697, %v1697
  %v1724 = vld [vmem:[%s5] sm:$0xff]
  %v1725 = vld [vmem:[%s5 + $0x8] sm:$0xff]
  %v1726 = vld [vmem:[%s5 + $0x10] sm:$0xff]
  %v1727 = vld [vmem:[%s5 + $0x18] sm:$0xff]
  %v1728 = vld [vmem:[%s5 + $0x20] sm:$0xff]
  %v1729 = vld [vmem:[%s5 + $0x28] sm:$0xff]
  %v1730 = vld [vmem:[%s5 + $0x30] sm:$0xff]
  %v1731 = vld [vmem:[%s5 + $0x38] sm:$0xff]
  %v1732 = vld [vmem:[%s5 + $0x40] sm:$0xff]
  %v1733 = vld [vmem:[%s5 + $0x48] sm:$0xff]
  %v1734 = vld [vmem:[%s5 + $0x50] sm:$0xff]
  %v1735 = vld [vmem:[%s5 + $0x58] sm:$0xff]
  %v1736 = vld [vmem:[%s5 + $0x60] sm:$0xff]
  %v1737 = vld [vmem:[%s5 + $0x68] sm:$0xff]
  %v1738 = vld [vmem:[%s5 + $0x70] sm:$0xff]
  %v1739 = vld [vmem:[%s5 + $0x78] sm:$0xff]
  %v1740 = vld [vmem:[%s5 + $0x80] sm:$0xff]
  %v1741 = vld [vmem:[%s5 + $0x88] sm:$0xff]
  %v1742 = vld [vmem:[%s5 + $0x90] sm:$0xff]
  %v1743 = vld [vmem:[%s5 + $0x98] sm:$0xff]
  %v1744 = vld [vmem:[%s5 + $0xa0] sm:$0xff]
  %v1745 = vld [vmem:[%s5 + $0xa8] sm:$0xff]
  %v1746 = vld [vmem:[%s5 + $0xb0] sm:$0xff]
  %v1747 = vld [vmem:[%s5 + $0xb8] sm:$0xff]
  %v1748 = vld [vmem:[%s5 + $0xc0] sm:$0xff]
  %v1749 = vld [vmem:[%s5 + $0xc8] sm:$0xff]
  %v1750 = vld [vmem:[%s5 + $0xd0] sm:$0xff]
  %v1751 = vld [vmem:[%s5 + $0xd8] sm:$0xff]
  %v1752 = vld [vmem:[%s5 + $0xe0] sm:$0xff]
  %v1753 = vld [vmem:[%s5 + $0xe8] sm:$0xff]
  %v1754 = vld [vmem:[%s5 + $0xf0] sm:$0xff]
  %v1755 = vld [vmem:[%s5 + $0xf8] sm:$0xff]
  %v1756 = vld [vmem:[%s5 + $0x100] sm:$0xff]
  %v1757 = vld [vmem:[%s5 + $0x108] sm:$0xff]
  %v1758 = vld [vmem:[%s5 + $0x110] sm:$0xff]
  %v1759 = vld [vmem:[%s5 + $0x118] sm:$0xff]
  %v1760 = vld [vmem:[%s5 + $0x120] sm:$0xff]
  %v1761 = vld [vmem:[%s5 + $0x128] sm:$0xff]
  %v1762 = vld [vmem:[%s5 + $0x130] sm:$0xff]
  %v1763 = vld [vmem:[%s5 + $0x138] sm:$0xff]
  %v1764 = vld [vmem:[%s5 + $0x140] sm:$0xff]
  %v1765 = vld [vmem:[%s5 + $0x148] sm:$0xff]
  %v1766 = vld [vmem:[%s5 + $0x150] sm:$0xff]
  %v1767 = vld [vmem:[%s5 + $0x158] sm:$0xff]
  %v1768 = vld [vmem:[%s5 + $0x160] sm:$0xff]
  %v1769 = vld [vmem:[%s5 + $0x168] sm:$0xff]
  %v1770 = vld [vmem:[%s5 + $0x170] sm:$0xff]
  %v1771 = vld [vmem:[%s5 + $0x178] sm:$0xff]
  %v1772 = vld [vmem:[%s5 + $0x180] sm:$0xff]
  %v1773 = vld [vmem:[%s5 + $0x188] sm:$0xff]
  %v1774 = vld [vmem:[%s5 + $0x190] sm:$0xff]
  %v1775 = vld [vmem:[%s5 + $0x198] sm:$0xff]
  %v1776 = vld [vmem:[%s5 + $0x1a0] sm:$0xff]
  %v1777 = vld [vmem:[%s5 + $0x1a8] sm:$0xff]
  %v1778 = vld [vmem:[%s5 + $0x1b0] sm:$0xff]
  %v1779 = vld [vmem:[%s5 + $0x1b8] sm:$0xff]
  %v1780 = vld [vmem:[%s5 + $0x1c0] sm:$0xff]
  %v1781 = vld [vmem:[%s5 + $0x1c8] sm:$0xff]
  %v1782 = vld [vmem:[%s5 + $0x1d0] sm:$0xff]
  %v1783 = vld [vmem:[%s5 + $0x1d8] sm:$0xff]
  %v1784 = vld [vmem:[%s5 + $0x1e0] sm:$0xff]
  %v1785 = vld [vmem:[%s5 + $0x1e8] sm:$0xff]
  %v1786 = vld [vmem:[%s5 + $0x1f0] sm:$0xff]
  %v1787 = vld [vmem:[%s5 + $0x1f8] sm:$0xff]
  %v1788 = vld [vmem:[%s5 + $0x200] sm:$0xff]
  %v1789 = vld [vmem:[%s5 + $0x208] sm:$0xff]
  %v1790 = vld [vmem:[%s5 + $0x210] sm:$0xff]
  %v1791 = vld [vmem:[%s5 + $0x218] sm:$0xff]
  %v1792 = vld [vmem:[%s5 + $0x220] sm:$0xff]
  %v1793 = vld [vmem:[%s5 + $0x228] sm:$0xff]
  %v1794 = vld [vmem:[%s5 + $0x230] sm:$0xff]
  %v1795 = vld [vmem:[%s5 + $0x238] sm:$0xff]
  %v1796 = vld [vmem:[%s5 + $0x240] sm:$0xff]
  %v1797 = vld [vmem:[%s5 + $0x248] sm:$0xff]
  %v1798 = vld [vmem:[%s5 + $0x250] sm:$0xff]
  %v1799 = vld [vmem:[%s5 + $0x258] sm:$0xff]
  %v1800 = vld [vmem:[%s5 + $0x260] sm:$0xff]
  %v1801 = vld [vmem:[%s5 + $0x268] sm:$0xff]
  %v1802 = vld [vmem:[%s5 + $0x270] sm:$0xff]
  %v1803 = vld [vmem:[%s5 + $0x278] sm:$0xff]
  %v1804 = vld [vmem:[%s5 + $0x280] sm:$0xff]
  %v1805 = vld [vmem:[%s5 + $0x288] sm:$0xff]
  %v1806 = vld [vmem:[%s5 + $0x290] sm:$0xff]
  %v1807 = vld [vmem:[%s5 + $0x298] sm:$0xff]
  %v1808 = vld [vmem:[%s5 + $0x2a0] sm:$0xff]
  %v1809 = vld [vmem:[%s5 + $0x2a8] sm:$0xff]
  %v1810 = vld [vmem:[%s5 + $0x2b0] sm:$0xff]
  %v1811 = vld [vmem:[%s5 + $0x2b8] sm:$0xff]
  %v1812 = vld [vmem:[%s5 + $0x2c0] sm:$0xff]
  %v1813 = vld [vmem:[%s5 + $0x2c8] sm:$0xff]
  %v1814 = vld [vmem:[%s5 + $0x2d0] sm:$0xff]
  %v1815 = vld [vmem:[%s5 + $0x2d8] sm:$0xff]
  %v1816 = vld [vmem:[%s5 + $0x2e0] sm:$0xff]
  %v1817 = vld [vmem:[%s5 + $0x2e8] sm:$0xff]
  %v1818 = vld [vmem:[%s5 + $0x2f0] sm:$0xff]
  %v1819 = vld [vmem:[%s5 + $0x2f8] sm:$0xff]
  %v1820 = vld [vmem:[%s5 + $0x300] sm:$0xff]
  %v1821 = vld [vmem:[%s5 + $0x308] sm:$0xff]
  %v1822 = vld [vmem:[%s5 + $0x310] sm:$0xff]
  %v1823 = vld [vmem:[%s5 + $0x318] sm:$0xff]
  %v1824 = vld [vmem:[%s5 + $0x320] sm:$0xff]
  %v1825 = vld [vmem:[%s5 + $0x328] sm:$0xff]
  %v1826 = vld [vmem:[%s5 + $0x330] sm:$0xff]
  %v1827 = vld [vmem:[%s5 + $0x338] sm:$0xff]
  %v1828 = vld [vmem:[%s5 + $0x340] sm:$0xff]
  %v1829 = vld [vmem:[%s5 + $0x348] sm:$0xff]
  %v1830 = vld [vmem:[%s5 + $0x350] sm:$0xff]
  %v1831 = vld [vmem:[%s5 + $0x358] sm:$0xff]
  %v1832 = vld [vmem:[%s5 + $0x360] sm:$0xff]
  %v1833 = vld [vmem:[%s5 + $0x368] sm:$0xff]
  %v1834 = vld [vmem:[%s5 + $0x370] sm:$0xff]
  %v1835 = vld [vmem:[%s5 + $0x378] sm:$0xff]
  %v1836 = vld [vmem:[%s5 + $0x380] sm:$0xff]
  %v1837 = vld [vmem:[%s5 + $0x388] sm:$0xff]
  %v1838 = vld [vmem:[%s5 + $0x390] sm:$0xff]
  %v1839 = vld [vmem:[%s5 + $0x398] sm:$0xff]
  %v1840 = vld [vmem:[%s5 + $0x3a0] sm:$0xff]
  %v1841 = vld [vmem:[%s5 + $0x3a8] sm:$0xff]
  %v1842 = vld [vmem:[%s5 + $0x3b0] sm:$0xff]
  %v1843 = vld [vmem:[%s5 + $0x3b8] sm:$0xff]
  %v1844 = vld [vmem:[%s5 + $0x3c0] sm:$0xff]
  %v1845 = vld [vmem:[%s5 + $0x3c8] sm:$0xff]
  %v1846 = vld [vmem:[%s5 + $0x3d0] sm:$0xff]
  %v1847 = vld [vmem:[%s5 + $0x3d8] sm:$0xff]
  %v1848 = vld [vmem:[%s5 + $0x3e0] sm:$0xff]
  %v1849 = vld [vmem:[%s5 + $0x3e8] sm:$0xff]
  %v1850 = vld [vmem:[%s5 + $0x3f0] sm:$0xff]
  %v1851 = vld [vmem:[%s5 + $0x3f8] sm:$0xff]
  %v1852 = vld [vmem:[%s5 + $0x400] sm:$0xff]
  %v1853 = vld [vmem:[%s5 + $0x408] sm:$0xff]
  %v1854 = vld [vmem:[%s5 + $0x410] sm:$0xff]
  %v1855 = vld [vmem:[%s5 + $0x418] sm:$0xff]
  %v1856 = vld [vmem:[%s5 + $0x420] sm:$0xff]
  %v1857 = vld [vmem:[%s5 + $0x428] sm:$0xff]
  %v1858 = vld [vmem:[%s5 + $0x430] sm:$0xff]
  %v1859 = vld [vmem:[%s5 + $0x438] sm:$0xff]
  %v1860 = vld [vmem:[%s5 + $0x440] sm:$0xff]
  %v1861 = vld [vmem:[%s5 + $0x448] sm:$0xff]
  %v1862 = vld [vmem:[%s5 + $0x450] sm:$0xff]
  %v1863 = vld [vmem:[%s5 + $0x458] sm:$0xff]
  %v1864 = vld [vmem:[%s5 + $0x460] sm:$0xff]
  %v1865 = vld [vmem:[%s5 + $0x468] sm:$0xff]
  %v1866 = vld [vmem:[%s5 + $0x470] sm:$0xff]
  %v1867 = vld [vmem:[%s5 + $0x478] sm:$0xff]
  %v1868 = vld [vmem:[%s6] sm:$0xf]
  %v1870 = vlaneseq
  %v1871 = vshrl.u32 %v1870, 7
  %v1872 = vsub.s32 0, %v1871
  %v1873 = vrot.slane %v1868, %v1872
  %v1874 = vlaneseq
  %v1875 = vshrl.u32 %v1874, 7
  %v1876 = vsub.s32 1, %v1875
  %v1877 = vrot.slane %v1868, %v1876
  %v1878 = vlaneseq
  %v1879 = vshrl.u32 %v1878, 7
  %v1880 = vsub.s32 2, %v1879
  %v1881 = vrot.slane %v1868, %v1880
  %v1882 = vlaneseq
  %v1883 = vshrl.u32 %v1882, 7
  %v1884 = vsub.s32 3, %v1883
  %v1885 = vrot.slane %v1868, %v1884
  %v2034 = vunpack.c.l.b16 %v1724
  %v2035 = vunpack.c.h.b16 %v1724
  %v2036 = vunpack.c.l.b16 %v1725
  %v2037 = vunpack.c.h.b16 %v1725
  %v2038 = vunpack.c.l.b16 %v1726
  %v2039 = vunpack.c.h.b16 %v1726
  %v2040 = vunpack.c.l.b16 %v1727
  %v2041 = vunpack.c.h.b16 %v1727
  %v2042 = vunpack.c.l.b16 %v1728
  %v2043 = vunpack.c.h.b16 %v1728
  %v2044 = vunpack.c.l.b16 %v1729
  %v2045 = vunpack.c.h.b16 %v1729
  %v2046 = vunpack.c.l.b16 %v1730
  %v2047 = vunpack.c.h.b16 %v1730
  %v2048 = vunpack.c.l.b16 %v1731
  %v2049 = vunpack.c.h.b16 %v1731
  %v2050 = vunpack.c.l.b16 %v1732
  %v2051 = vunpack.c.h.b16 %v1732
  %v2052 = vunpack.c.l.b16 %v1733
  %v2053 = vunpack.c.h.b16 %v1733
  %v2054 = vunpack.c.l.b16 %v1734
  %v2055 = vunpack.c.h.b16 %v1734
  %v2056 = vunpack.c.l.b16 %v1735
  %v2057 = vunpack.c.h.b16 %v1735
  %v2058 = vunpack.c.l.b16 %v1736
  %v2059 = vunpack.c.h.b16 %v1736
  %v2060 = vunpack.c.l.b16 %v1737
  %v2061 = vunpack.c.h.b16 %v1737
  %v2062 = vunpack.c.l.b16 %v1738
  %v2063 = vunpack.c.h.b16 %v1738
  %v2064 = vunpack.c.l.b16 %v1739
  %v2065 = vunpack.c.h.b16 %v1739
  %v2066 = vunpack.c.l.b16 %v1740
  %v2067 = vunpack.c.h.b16 %v1740
  %v2068 = vunpack.c.l.b16 %v1741
  %v2069 = vunpack.c.h.b16 %v1741
  %v2070 = vunpack.c.l.b16 %v1742
  %v2071 = vunpack.c.h.b16 %v1742
  %v2072 = vunpack.c.l.b16 %v1743
  %v2073 = vunpack.c.h.b16 %v1743
  %v2074 = vunpack.c.l.b16 %v1744
  %v2075 = vunpack.c.h.b16 %v1744
  %v2076 = vunpack.c.l.b16 %v1745
  %v2077 = vunpack.c.h.b16 %v1745
  %v2078 = vunpack.c.l.b16 %v1746
  %v2079 = vunpack.c.h.b16 %v1746
  %v2080 = vunpack.c.l.b16 %v1747
  %v2081 = vunpack.c.h.b16 %v1747
  %v2082 = vunpack.c.l.b16 %v1748
  %v2083 = vunpack.c.h.b16 %v1748
  %v2084 = vunpack.c.l.b16 %v1749
  %v2085 = vunpack.c.h.b16 %v1749
  %v2086 = vunpack.c.l.b16 %v1750
  %v2087 = vunpack.c.h.b16 %v1750
  %v2088 = vunpack.c.l.b16 %v1751
  %v2089 = vunpack.c.h.b16 %v1751
  %v2090 = vunpack.c.l.b16 %v1752
  %v2091 = vunpack.c.h.b16 %v1752
  %v2092 = vunpack.c.l.b16 %v1753
  %v2093 = vunpack.c.h.b16 %v1753
  %v2094 = vunpack.c.l.b16 %v1754
  %v2095 = vunpack.c.h.b16 %v1754
  %v2096 = vunpack.c.l.b16 %v1755
  %v2097 = vunpack.c.h.b16 %v1755
  %v2098 = vunpack.c.l.b16 %v1756
  %v2099 = vunpack.c.h.b16 %v1756
  %v2100 = vunpack.c.l.b16 %v1757
  %v2101 = vunpack.c.h.b16 %v1757
  %v2102 = vunpack.c.l.b16 %v1758
  %v2103 = vunpack.c.h.b16 %v1758
  %v2104 = vunpack.c.l.b16 %v1759
  %v2105 = vunpack.c.h.b16 %v1759
  %v2106 = vunpack.c.l.b16 %v1760
  %v2107 = vunpack.c.h.b16 %v1760
  %v2108 = vunpack.c.l.b16 %v1761
  %v2109 = vunpack.c.h.b16 %v1761
  %v2110 = vunpack.c.l.b16 %v1762
  %v2111 = vunpack.c.h.b16 %v1762
  %v2112 = vunpack.c.l.b16 %v1763
  %v2113 = vunpack.c.h.b16 %v1763
  %v2114 = vunpack.c.l.b16 %v1764
  %v2115 = vunpack.c.h.b16 %v1764
  %v2116 = vunpack.c.l.b16 %v1765
  %v2117 = vunpack.c.h.b16 %v1765
  %v2118 = vunpack.c.l.b16 %v1766
  %v2119 = vunpack.c.h.b16 %v1766
  %v2120 = vunpack.c.l.b16 %v1767
  %v2121 = vunpack.c.h.b16 %v1767
  %v2122 = vunpack.c.l.b16 %v1768
  %v2123 = vunpack.c.h.b16 %v1768
  %v2124 = vunpack.c.l.b16 %v1769
  %v2125 = vunpack.c.h.b16 %v1769
  %v2126 = vunpack.c.l.b16 %v1770
  %v2127 = vunpack.c.h.b16 %v1770
  %v2128 = vunpack.c.l.b16 %v1771
  %v2129 = vunpack.c.h.b16 %v1771
  %v2130 = vunpack.c.l.b16 %v1772
  %v2131 = vunpack.c.h.b16 %v1772
  %v2132 = vunpack.c.l.b16 %v1773
  %v2133 = vunpack.c.h.b16 %v1773
  %v2134 = vunpack.c.l.b16 %v1774
  %v2135 = vunpack.c.h.b16 %v1774
  %v2136 = vunpack.c.l.b16 %v1775
  %v2137 = vunpack.c.h.b16 %v1775
  %v2138 = vunpack.c.l.b16 %v1776
  %v2139 = vunpack.c.h.b16 %v1776
  %v2140 = vunpack.c.l.b16 %v1777
  %v2141 = vunpack.c.h.b16 %v1777
  %v2142 = vunpack.c.l.b16 %v1778
  %v2143 = vunpack.c.h.b16 %v1778
  %v2144 = vunpack.c.l.b16 %v1779
  %v2145 = vunpack.c.h.b16 %v1779
  %v2146 = vunpack.c.l.b16 %v1780
  %v2147 = vunpack.c.h.b16 %v1780
  %v2148 = vunpack.c.l.b16 %v1781
  %v2149 = vunpack.c.h.b16 %v1781
  %v2150 = vunpack.c.l.b16 %v1782
  %v2151 = vunpack.c.h.b16 %v1782
  %v2152 = vunpack.c.l.b16 %v1783
  %v2153 = vunpack.c.h.b16 %v1783
  %v2154 = vunpack.c.l.b16 %v1784
  %v2155 = vunpack.c.h.b16 %v1784
  %v2156 = vunpack.c.l.b16 %v1785
  %v2157 = vunpack.c.h.b16 %v1785
  %v2158 = vunpack.c.l.b16 %v1786
  %v2159 = vunpack.c.h.b16 %v1786
  %v2160 = vunpack.c.l.b16 %v1787
  %v2161 = vunpack.c.h.b16 %v1787
  %v2162 = vunpack.c.l.b16 %v1788
  %v2163 = vunpack.c.h.b16 %v1788
  %v2164 = vunpack.c.l.b16 %v1789
  %v2165 = vunpack.c.h.b16 %v1789
  %v2166 = vunpack.c.l.b16 %v1790
  %v2167 = vunpack.c.h.b16 %v1790
  %v2168 = vunpack.c.l.b16 %v1791
  %v2169 = vunpack.c.h.b16 %v1791
  %v2170 = vunpack.c.l.b16 %v1792
  %v2171 = vunpack.c.h.b16 %v1792
  %v2172 = vunpack.c.l.b16 %v1793
  %v2173 = vunpack.c.h.b16 %v1793
  %v2174 = vunpack.c.l.b16 %v1794
  %v2175 = vunpack.c.h.b16 %v1794
  %v2176 = vunpack.c.l.b16 %v1795
  %v2177 = vunpack.c.h.b16 %v1795
  %v2178 = vunpack.c.l.b16 %v1796
  %v2179 = vunpack.c.h.b16 %v1796
  %v2180 = vunpack.c.l.b16 %v1797
  %v2181 = vunpack.c.h.b16 %v1797
  %v2182 = vunpack.c.l.b16 %v1798
  %v2183 = vunpack.c.h.b16 %v1798
  %v2184 = vunpack.c.l.b16 %v1799
  %v2185 = vunpack.c.h.b16 %v1799
  %v2186 = vunpack.c.l.b16 %v1800
  %v2187 = vunpack.c.h.b16 %v1800
  %v2188 = vunpack.c.l.b16 %v1801
  %v2189 = vunpack.c.h.b16 %v1801
  %v2190 = vunpack.c.l.b16 %v1802
  %v2191 = vunpack.c.h.b16 %v1802
  %v2192 = vunpack.c.l.b16 %v1803
  %v2193 = vunpack.c.h.b16 %v1803
  %v2194 = vunpack.c.l.b16 %v1804
  %v2195 = vunpack.c.h.b16 %v1804
  %v2196 = vunpack.c.l.b16 %v1805
  %v2197 = vunpack.c.h.b16 %v1805
  %v2198 = vunpack.c.l.b16 %v1806
  %v2199 = vunpack.c.h.b16 %v1806
  %v2200 = vunpack.c.l.b16 %v1807
  %v2201 = vunpack.c.h.b16 %v1807
  %v2202 = vunpack.c.l.b16 %v1808
  %v2203 = vunpack.c.h.b16 %v1808
  %v2204 = vunpack.c.l.b16 %v1809
  %v2205 = vunpack.c.h.b16 %v1809
  %v2206 = vunpack.c.l.b16 %v1810
  %v2207 = vunpack.c.h.b16 %v1810
  %v2208 = vunpack.c.l.b16 %v1811
  %v2209 = vunpack.c.h.b16 %v1811
  %v2210 = vunpack.c.l.b16 %v1812
  %v2211 = vunpack.c.h.b16 %v1812
  %v2212 = vunpack.c.l.b16 %v1813
  %v2213 = vunpack.c.h.b16 %v1813
  %v2214 = vunpack.c.l.b16 %v1814
  %v2215 = vunpack.c.h.b16 %v1814
  %v2216 = vunpack.c.l.b16 %v1815
  %v2217 = vunpack.c.h.b16 %v1815
  %v2218 = vunpack.c.l.b16 %v1816
  %v2219 = vunpack.c.h.b16 %v1816
  %v2220 = vunpack.c.l.b16 %v1817
  %v2221 = vunpack.c.h.b16 %v1817
  %v2222 = vunpack.c.l.b16 %v1818
  %v2223 = vunpack.c.h.b16 %v1818
  %v2224 = vunpack.c.l.b16 %v1819
  %v2225 = vunpack.c.h.b16 %v1819
  %v2226 = vunpack.c.l.b16 %v1820
  %v2227 = vunpack.c.h.b16 %v1820
  %v2228 = vunpack.c.l.b16 %v1821
  %v2229 = vunpack.c.h.b16 %v1821
  %v2230 = vunpack.c.l.b16 %v1822
  %v2231 = vunpack.c.h.b16 %v1822
  %v2232 = vunpack.c.l.b16 %v1823
  %v2233 = vunpack.c.h.b16 %v1823
  %v2234 = vunpack.c.l.b16 %v1824
  %v2235 = vunpack.c.h.b16 %v1824
  %v2236 = vunpack.c.l.b16 %v1825
  %v2237 = vunpack.c.h.b16 %v1825
  %v2238 = vunpack.c.l.b16 %v1826
  %v2239 = vunpack.c.h.b16 %v1826
  %v2240 = vunpack.c.l.b16 %v1827
  %v2241 = vunpack.c.h.b16 %v1827
  %v2242 = vunpack.c.l.b16 %v1828
  %v2243 = vunpack.c.h.b16 %v1828
  %v2244 = vunpack.c.l.b16 %v1829
  %v2245 = vunpack.c.h.b16 %v1829
  %v2246 = vunpack.c.l.b16 %v1830
  %v2247 = vunpack.c.h.b16 %v1830
  %v2248 = vunpack.c.l.b16 %v1831
  %v2249 = vunpack.c.h.b16 %v1831
  %v2250 = vunpack.c.l.b16 %v1832
  %v2251 = vunpack.c.h.b16 %v1832
  %v2252 = vunpack.c.l.b16 %v1833
  %v2253 = vunpack.c.h.b16 %v1833
  %v2254 = vunpack.c.l.b16 %v1834
  %v2255 = vunpack.c.h.b16 %v1834
  %v2256 = vunpack.c.l.b16 %v1835
  %v2257 = vunpack.c.h.b16 %v1835
  %v2258 = vunpack.c.l.b16 %v1836
  %v2259 = vunpack.c.h.b16 %v1836
  %v2260 = vunpack.c.l.b16 %v1837
  %v2261 = vunpack.c.h.b16 %v1837
  %v2262 = vunpack.c.l.b16 %v1838
  %v2263 = vunpack.c.h.b16 %v1838
  %v2264 = vunpack.c.l.b16 %v1839
  %v2265 = vunpack.c.h.b16 %v1839
  %v2266 = vunpack.c.l.b16 %v1840
  %v2267 = vunpack.c.h.b16 %v1840
  %v2268 = vunpack.c.l.b16 %v1841
  %v2269 = vunpack.c.h.b16 %v1841
  %v2270 = vunpack.c.l.b16 %v1842
  %v2271 = vunpack.c.h.b16 %v1842
  %v2272 = vunpack.c.l.b16 %v1843
  %v2273 = vunpack.c.h.b16 %v1843
  %v2274 = vunpack.c.l.b16 %v1844
  %v2275 = vunpack.c.h.b16 %v1844
  %v2276 = vunpack.c.l.b16 %v1845
  %v2277 = vunpack.c.h.b16 %v1845
  %v2278 = vunpack.c.l.b16 %v1846
  %v2279 = vunpack.c.h.b16 %v1846
  %v2280 = vunpack.c.l.b16 %v1847
  %v2281 = vunpack.c.h.b16 %v1847
  %v2282 = vunpack.c.l.b16 %v1848
  %v2283 = vunpack.c.h.b16 %v1848
  %v2284 = vunpack.c.l.b16 %v1849
  %v2285 = vunpack.c.h.b16 %v1849
  %v2286 = vunpack.c.l.b16 %v1850
  %v2287 = vunpack.c.h.b16 %v1850
  %v2288 = vunpack.c.l.b16 %v1851
  %v2289 = vunpack.c.h.b16 %v1851
  %v2290 = vunpack.c.l.b16 %v1852
  %v2291 = vunpack.c.h.b16 %v1852
  %v2292 = vunpack.c.l.b16 %v1853
  %v2293 = vunpack.c.h.b16 %v1853
  %v2294 = vunpack.c.l.b16 %v1854
  %v2295 = vunpack.c.h.b16 %v1854
  %v2296 = vunpack.c.l.b16 %v1855
  %v2297 = vunpack.c.h.b16 %v1855
  %v2298 = vunpack.c.l.b16 %v1856
  %v2299 = vunpack.c.h.b16 %v1856
  %v2300 = vunpack.c.l.b16 %v1857
  %v2301 = vunpack.c.h.b16 %v1857
  %v2302 = vunpack.c.l.b16 %v1858
  %v2303 = vunpack.c.h.b16 %v1858
  %v2304 = vunpack.c.l.b16 %v1859
  %v2305 = vunpack.c.h.b16 %v1859
  %v2306 = vunpack.c.l.b16 %v1860
  %v2307 = vunpack.c.h.b16 %v1860
  %v2308 = vunpack.c.l.b16 %v1861
  %v2309 = vunpack.c.h.b16 %v1861
  %v2310 = vunpack.c.l.b16 %v1862
  %v2311 = vunpack.c.h.b16 %v1862
  %v2312 = vunpack.c.l.b16 %v1863
  %v2313 = vunpack.c.h.b16 %v1863
  %v2314 = vunpack.c.l.b16 %v1864
  %v2315 = vunpack.c.h.b16 %v1864
  %v2316 = vunpack.c.l.b16 %v1865
  %v2317 = vunpack.c.h.b16 %v1865
  %v2318 = vunpack.c.l.b16 %v1866
  %v2319 = vunpack.c.h.b16 %v1866
  %v2320 = vunpack.c.l.b16 %v1867
  %v2321 = vunpack.c.h.b16 %v1867
  %v2322 = vpack.c.b16 %v2038, %v2034
  %v2323 = vpack.c.b16 %v2039, %v2035
  %v2324 = vpack.c.b16 %v2040, %v2036
  %v2325 = vpack.c.b16 %v2041, %v2037
  %v2326 = vpack.c.b16 %v2046, %v2042
  %v2327 = vpack.c.b16 %v2047, %v2043
  %v2328 = vpack.c.b16 %v2048, %v2044
  %v2329 = vpack.c.b16 %v2049, %v2045
  %v2330 = vpack.c.b16 %v2054, %v2050
  %v2331 = vpack.c.b16 %v2055, %v2051
  %v2332 = vpack.c.b16 %v2056, %v2052
  %v2333 = vpack.c.b16 %v2057, %v2053
  %v2334 = vpack.c.b16 %v2062, %v2058
  %v2335 = vpack.c.b16 %v2063, %v2059
  %v2336 = vpack.c.b16 %v2064, %v2060
  %v2337 = vpack.c.b16 %v2065, %v2061
  %v2338 = vpack.c.b16 %v2070, %v2066
  %v2339 = vpack.c.b16 %v2071, %v2067
  %v2340 = vpack.c.b16 %v2072, %v2068
  %v2341 = vpack.c.b16 %v2073, %v2069
  %v2342 = vpack.c.b16 %v2078, %v2074
  %v2343 = vpack.c.b16 %v2079, %v2075
  %v2344 = vpack.c.b16 %v2080, %v2076
  %v2345 = vpack.c.b16 %v2081, %v2077
  %v2346 = vpack.c.b16 %v2086, %v2082
  %v2347 = vpack.c.b16 %v2087, %v2083
  %v2348 = vpack.c.b16 %v2088, %v2084
  %v2349 = vpack.c.b16 %v2089, %v2085
  %v2350 = vpack.c.b16 %v2094, %v2090
  %v2351 = vpack.c.b16 %v2095, %v2091
  %v2352 = vpack.c.b16 %v2096, %v2092
  %v2353 = vpack.c.b16 %v2097, %v2093
  %v2354 = vpack.c.b16 %v2102, %v2098
  %v2355 = vpack.c.b16 %v2103, %v2099
  %v2356 = vpack.c.b16 %v2104, %v2100
  %v2357 = vpack.c.b16 %v2105, %v2101
  %v2358 = vpack.c.b16 %v2110, %v2106
  %v2359 = vpack.c.b16 %v2111, %v2107
  %v2360 = vpack.c.b16 %v2112, %v2108
  %v2361 = vpack.c.b16 %v2113, %v2109
  %v2362 = vpack.c.b16 %v2118, %v2114
  %v2363 = vpack.c.b16 %v2119, %v2115
  %v2364 = vpack.c.b16 %v2120, %v2116
  %v2365 = vpack.c.b16 %v2121, %v2117
  %v2366 = vpack.c.b16 %v2126, %v2122
  %v2367 = vpack.c.b16 %v2127, %v2123
  %v2368 = vpack.c.b16 %v2128, %v2124
  %v2369 = vpack.c.b16 %v2129, %v2125
  %v2370 = vpack.c.b16 %v2134, %v2130
  %v2371 = vpack.c.b16 %v2135, %v2131
  %v2372 = vpack.c.b16 %v2136, %v2132
  %v2373 = vpack.c.b16 %v2137, %v2133
  %v2374 = vpack.c.b16 %v2142, %v2138
  %v2375 = vpack.c.b16 %v2143, %v2139
  %v2376 = vpack.c.b16 %v2144, %v2140
  %v2377 = vpack.c.b16 %v2145, %v2141
  %v2378 = vpack.c.b16 %v2150, %v2146
  %v2379 = vpack.c.b16 %v2151, %v2147
  %v2380 = vpack.c.b16 %v2152, %v2148
  %v2381 = vpack.c.b16 %v2153, %v2149
  %v2382 = vpack.c.b16 %v2158, %v2154
  %v2383 = vpack.c.b16 %v2159, %v2155
  %v2384 = vpack.c.b16 %v2160, %v2156
  %v2385 = vpack.c.b16 %v2161, %v2157
  %v2386 = vpack.c.b16 %v2166, %v2162
  %v2387 = vpack.c.b16 %v2167, %v2163
  %v2388 = vpack.c.b16 %v2168, %v2164
  %v2389 = vpack.c.b16 %v2169, %v2165
  %v2390 = vpack.c.b16 %v2174, %v2170
  %v2391 = vpack.c.b16 %v2175, %v2171
  %v2392 = vpack.c.b16 %v2176, %v2172
  %v2393 = vpack.c.b16 %v2177, %v2173
  %v2394 = vpack.c.b16 %v2182, %v2178
  %v2395 = vpack.c.b16 %v2183, %v2179
  %v2396 = vpack.c.b16 %v2184, %v2180
  %v2397 = vpack.c.b16 %v2185, %v2181
  %v2398 = vpack.c.b16 %v2190, %v2186
  %v2399 = vpack.c.b16 %v2191, %v2187
  %v2400 = vpack.c.b16 %v2192, %v2188
  %v2401 = vpack.c.b16 %v2193, %v2189
  %v2402 = vpack.c.b16 %v2198, %v2194
  %v2403 = vpack.c.b16 %v2199, %v2195
  %v2404 = vpack.c.b16 %v2200, %v2196
  %v2405 = vpack.c.b16 %v2201, %v2197
  %v2406 = vpack.c.b16 %v2206, %v2202
  %v2407 = vpack.c.b16 %v2207, %v2203
  %v2408 = vpack.c.b16 %v2208, %v2204
  %v2409 = vpack.c.b16 %v2209, %v2205
  %v2410 = vpack.c.b16 %v2214, %v2210
  %v2411 = vpack.c.b16 %v2215, %v2211
  %v2412 = vpack.c.b16 %v2216, %v2212
  %v2413 = vpack.c.b16 %v2217, %v2213
  %v2414 = vpack.c.b16 %v2222, %v2218
  %v2415 = vpack.c.b16 %v2223, %v2219
  %v2416 = vpack.c.b16 %v2224, %v2220
  %v2417 = vpack.c.b16 %v2225, %v2221
  %v2418 = vpack.c.b16 %v2230, %v2226
  %v2419 = vpack.c.b16 %v2231, %v2227
  %v2420 = vpack.c.b16 %v2232, %v2228
  %v2421 = vpack.c.b16 %v2233, %v2229
  %v2422 = vpack.c.b16 %v2238, %v2234
  %v2423 = vpack.c.b16 %v2239, %v2235
  %v2424 = vpack.c.b16 %v2240, %v2236
  %v2425 = vpack.c.b16 %v2241, %v2237
  %v2426 = vpack.c.b16 %v2246, %v2242
  %v2427 = vpack.c.b16 %v2247, %v2243
  %v2428 = vpack.c.b16 %v2248, %v2244
  %v2429 = vpack.c.b16 %v2249, %v2245
  %v2430 = vpack.c.b16 %v2254, %v2250
  %v2431 = vpack.c.b16 %v2255, %v2251
  %v2432 = vpack.c.b16 %v2256, %v2252
  %v2433 = vpack.c.b16 %v2257, %v2253
  %v2434 = vpack.c.b16 %v2262, %v2258
  %v2435 = vpack.c.b16 %v2263, %v2259
  %v2436 = vpack.c.b16 %v2264, %v2260
  %v2437 = vpack.c.b16 %v2265, %v2261
  %v2438 = vpack.c.b16 %v2270, %v2266
  %v2439 = vpack.c.b16 %v2271, %v2267
  %v2440 = vpack.c.b16 %v2272, %v2268
  %v2441 = vpack.c.b16 %v2273, %v2269
  %v2442 = vpack.c.b16 %v2278, %v2274
  %v2443 = vpack.c.b16 %v2279, %v2275
  %v2444 = vpack.c.b16 %v2280, %v2276
  %v2445 = vpack.c.b16 %v2281, %v2277
  %v2446 = vpack.c.b16 %v2286, %v2282
  %v2447 = vpack.c.b16 %v2287, %v2283
  %v2448 = vpack.c.b16 %v2288, %v2284
  %v2449 = vpack.c.b16 %v2289, %v2285
  %v2450 = vpack.c.b16 %v2294, %v2290
  %v2451 = vpack.c.b16 %v2295, %v2291
  %v2452 = vpack.c.b16 %v2296, %v2292
  %v2453 = vpack.c.b16 %v2297, %v2293
  %v2454 = vpack.c.b16 %v2302, %v2298
  %v2455 = vpack.c.b16 %v2303, %v2299
  %v2456 = vpack.c.b16 %v2304, %v2300
  %v2457 = vpack.c.b16 %v2305, %v2301
  %v2458 = vpack.c.b16 %v2310, %v2306
  %v2459 = vpack.c.b16 %v2311, %v2307
  %v2460 = vpack.c.b16 %v2312, %v2308
  %v2461 = vpack.c.b16 %v2313, %v2309
  %v2462 = vpack.c.b16 %v2318, %v2314
  %v2463 = vpack.c.b16 %v2319, %v2315
  %v2464 = vpack.c.b16 %v2320, %v2316
  %v2465 = vpack.c.b16 %v2321, %v2317
  %v2611 = vsel %vm1714, %v1723, 0
  %2613 = vmatprep.subr.bf16.mxu0 %v2323
  %2614 = vmatpush1.bf16.msra.mxu0 %v2322
  %2615 = vmatprep.subr.bf16.mxu0 %v2327
  %2616 = vmatpush1.bf16.msra.mxu0 %v2326
  %2617 = vmatprep.subr.bf16.mxu0 %v2331
  %2618 = vmatpush1.bf16.msra.mxu0 %v2330
  %2619 = vmatprep.subr.bf16.mxu0 %v2335
  %2620 = vmatpush1.bf16.msra.mxu0 %v2334
  %2621 = vmatprep.subr.bf16.mxu0 %v2339
  %2622 = vmatpush1.bf16.msra.mxu0 %v2338
  %2623 = vmatprep.subr.bf16.mxu0 %v2343
  %2624 = vmatpush1.bf16.msra.mxu0 %v2342
  %2625 = vmatprep.subr.bf16.mxu0 %v2347
  %2626 = vmatpush1.bf16.msra.mxu0 %v2346
  %2627 = vmatprep.subr.bf16.mxu0 %v2351
  %2628 = vmatpush1.bf16.msra.mxu0 %v2350
  %2629 = vmatprep.subr.bf16.mxu0 %v2355
  %2630 = vmatpush1.bf16.msra.mxu0 %v2354
  %2631 = vmatprep.subr.bf16.mxu0 %v2359
  %2632 = vmatpush1.bf16.msra.mxu0 %v2358
  %2633 = vmatprep.subr.bf16.mxu0 %v2363
  %2634 = vmatpush1.bf16.msra.mxu0 %v2362
  %2635 = vmatprep.subr.bf16.mxu0 %v2367
  %2636 = vmatpush1.bf16.msra.mxu0 %v2366
  %2637 = vmatprep.subr.bf16.mxu0 %v2371
  %2638 = vmatpush1.bf16.msra.mxu0 %v2370
  %2639 = vmatprep.subr.bf16.mxu0 %v2375
  %2640 = vmatpush1.bf16.msra.mxu0 %v2374
  %2641 = vmatprep.subr.bf16.mxu0 %v2379
  %2642 = vmatpush1.bf16.msra.mxu0 %v2378
  %2643 = vmatprep.subr.bf16.mxu0 %v2383
  %2644 = vmatpush1.bf16.msra.mxu0 %v2382
  %2645 = vmatprep.mubr.bf16.mxu0 %v1720
  %2646 = vmatmul.mubr.bf16.gmra.mrb[0].mxu0 %v1719
  %v2647 = vpop.f32.mrb[0].mxu0
  %v2648 = vadd.f32 %v1873, %v2647
  %v2649 = vpop.f32.mrb[0].mxu0
  %v2650 = vadd.f32 %v1877, %v2649
  %v2651 = vpop.f32.mrb[0].mxu0
  %v2652 = vpop.f32.mrb[0].mxu0
  %2653 = vdwg.mxu0
  %2654 = vmatprep.subr.bf16.mxu0 %v2387
  %2655 = vmatpush1.bf16.msra.mxu0 %v2386
  %2656 = vmatprep.subr.bf16.mxu0 %v2391
  %2657 = vmatpush1.bf16.msra.mxu0 %v2390
  %2658 = vmatprep.subr.bf16.mxu0 %v2395
  %2659 = vmatpush1.bf16.msra.mxu0 %v2394
  %2660 = vmatprep.subr.bf16.mxu0 %v2399
  %2661 = vmatpush1.bf16.msra.mxu0 %v2398
  %2662 = vmatprep.subr.bf16.mxu0 %v2403
  %2663 = vmatpush1.bf16.msra.mxu0 %v2402
  %2664 = vmatprep.subr.bf16.mxu0 %v2407
  %2665 = vmatpush1.bf16.msra.mxu0 %v2406
  %2666 = vmatprep.subr.bf16.mxu0 %v2411
  %2667 = vmatpush1.bf16.msra.mxu0 %v2410
  %2668 = vmatprep.subr.bf16.mxu0 %v2415
  %2669 = vmatpush1.bf16.msra.mxu0 %v2414
  %2670 = vmatprep.subr.bf16.mxu0 %v2419
  %2671 = vmatpush1.bf16.msra.mxu0 %v2418
  %2672 = vmatprep.subr.bf16.mxu0 %v2423
  %2673 = vmatpush1.bf16.msra.mxu0 %v2422
  %2674 = vmatprep.subr.bf16.mxu0 %v2427
  %2675 = vmatpush1.bf16.msra.mxu0 %v2426
  %2676 = vmatprep.subr.bf16.mxu0 %v2431
  %2677 = vmatpush1.bf16.msra.mxu0 %v2430
  %2678 = vmatprep.subr.bf16.mxu0 %v2435
  %2679 = vmatpush1.bf16.msra.mxu0 %v2434
  %2680 = vmatprep.subr.bf16.mxu0 %v2439
  %2681 = vmatpush1.bf16.msra.mxu0 %v2438
  %2682 = vmatprep.subr.bf16.mxu0 %v2443
  %2683 = vmatpush1.bf16.msra.mxu0 %v2442
  %2684 = vmatprep.subr.bf16.mxu0 %v2447
  %2685 = vmatpush1.bf16.msra.mxu0 %v2446
  %2686 = vmatprep.mubr.bf16.mxu0 %v1722
  %2687 = vmatmul.mubr.bf16.gmra.mrb[0].mxu0 %v1721
  %v2688 = vpop.f32.mrb[0].mxu0
  %v2689 = vadd.f32 %v2648, %v2688
  %v2690 = vpop.f32.mrb[0].mxu0
  %v2691 = vadd.f32 %v2650, %v2690
  %v2692 = vpop.f32.mrb[0].mxu0
  %v2693 = vpop.f32.mrb[0].mxu0
  %2694 = vdwg.mxu0
  %2695 = vmatprep.subr.bf16.mxu0 %v2451
  %2696 = vmatpush1.bf16.msra.mxu0 %v2450
  %2697 = vmatprep.subr.bf16.mxu0 %v2455
  %2698 = vmatpush1.bf16.msra.mxu0 %v2454
  %2699 = vmatprep.subr.bf16.mxu0 %v2459
  %2700 = vmatpush1.bf16.msra.mxu0 %v2458
  %2701 = vmatprep.subr.bf16.mxu0 %v2463
  %2702 = vmatpush1.bf16.msra.mxu0 %v2462
  %2703 = vmatprep.subr.bf16.mxu0 0
  %2704 = vmatpush1.bf16.msra.mxu0 0
  %2705 = vmatprep.subr.bf16.mxu0 0
  %2706 = vmatpush1.bf16.msra.mxu0 0
  %2707 = vmatprep.subr.bf16.mxu0 0
  %2708 = vmatpush1.bf16.msra.mxu0 0
  %2709 = vmatprep.subr.bf16.mxu0 0
  %2710 = vmatpush1.bf16.msra.mxu0 0
  %2711 = vmatprep.subr.bf16.mxu0 0
  %2712 = vmatpush1.bf16.msra.mxu0 0
  %2713 = vmatprep.subr.bf16.mxu0 0
  %2714 = vmatpush1.bf16.msra.mxu0 0
  %2715 = vmatprep.subr.bf16.mxu0 0
  %2716 = vmatpush1.bf16.msra.mxu0 0
  %2717 = vmatprep.subr.bf16.mxu0 0
  %2718 = vmatpush1.bf16.msra.mxu0 0
  %2719 = vmatprep.subr.bf16.mxu0 0
  %2720 = vmatpush1.bf16.msra.mxu0 0
  %2721 = vmatprep.subr.bf16.mxu0 0
  %2722 = vmatpush1.bf16.msra.mxu0 0
  %2723 = vmatprep.subr.bf16.mxu0 0
  %2724 = vmatpush1.bf16.msra.mxu0 0
  %2725 = vmatprep.subr.bf16.mxu0 0
  %2726 = vmatpush1.bf16.msra.mxu0 0
  %2727 = vmatprep.mubr.bf16.mxu0 0
  %2728 = vmatmul.mubr.bf16.gmra.mrb[0].mxu0 %v2611
  %v2729 = vpop.f32.mrb[0].mxu0
  %v2730 = vadd.f32 %v2689, %v2729
  %v2731 = vpop.f32.mrb[0].mxu0
  %v2732 = vadd.f32 %v2691, %v2731
  %v2733 = vpop.f32.mrb[0].mxu0
  %v2734 = vpop.f32.mrb[0].mxu0
  %2735 = vdwg.mxu0
  %2736 = vmatprep.subr.bf16.mxu0 %v2325
  %2737 = vmatpush1.bf16.msra.mxu0 %v2324
  %2738 = vmatprep.subr.bf16.mxu0 %v2329
  %2739 = vmatpush1.bf16.msra.mxu0 %v2328
  %2740 = vmatprep.subr.bf16.mxu0 %v2333
  %2741 = vmatpush1.bf16.msra.mxu0 %v2332
  %2742 = vmatprep.subr.bf16.mxu0 %v2337
  %2743 = vmatpush1.bf16.msra.mxu0 %v2336
  %2744 = vmatprep.subr.bf16.mxu0 %v2341
  %2745 = vmatpush1.bf16.msra.mxu0 %v2340
  %2746 = vmatprep.subr.bf16.mxu0 %v2345
  %2747 = vmatpush1.bf16.msra.mxu0 %v2344
  %2748 = vmatprep.subr.bf16.mxu0 %v2349
  %2749 = vmatpush1.bf16.msra.mxu0 %v2348
  %2750 = vmatprep.subr.bf16.mxu0 %v2353
  %2751 = vmatpush1.bf16.msra.mxu0 %v2352
  %2752 = vmatprep.subr.bf16.mxu0 %v2357
  %2753 = vmatpush1.bf16.msra.mxu0 %v2356
  %2754 = vmatprep.subr.bf16.mxu0 %v2361
  %2755 = vmatpush1.bf16.msra.mxu0 %v2360
  %2756 = vmatprep.subr.bf16.mxu0 %v2365
  %2757 = vmatpush1.bf16.msra.mxu0 %v2364
  %2758 = vmatprep.subr.bf16.mxu0 %v2369
  %2759 = vmatpush1.bf16.msra.mxu0 %v2368
  %2760 = vmatprep.subr.bf16.mxu0 %v2373
  %2761 = vmatpush1.bf16.msra.mxu0 %v2372
  %2762 = vmatprep.subr.bf16.mxu0 %v2377
  %2763 = vmatpush1.bf16.msra.mxu0 %v2376
  %2764 = vmatprep.subr.bf16.mxu0 %v2381
  %2765 = vmatpush1.bf16.msra.mxu0 %v2380
  %2766 = vmatprep.subr.bf16.mxu0 %v2385
  %2767 = vmatpush1.bf16.msra.mxu0 %v2384
  %2768 = vmatprep.mubr.bf16.mxu0 %v1720
  %2769 = vmatmul.mubr.bf16.gmra.mrb[0].mxu0 %v1719
  %v2770 = vpop.f32.mrb[0].mxu0
  %v2771 = vadd.f32 %v1881, %v2770
  %v2772 = vpop.f32.mrb[0].mxu0
  %v2773 = vadd.f32 %v1885, %v2772
  %v2774 = vpop.f32.mrb[0].mxu0
  %v2775 = vpop.f32.mrb[0].mxu0
  %2776 = vdwg.mxu0
  %2777 = vmatprep.subr.bf16.mxu0 %v2389
  %2778 = vmatpush1.bf16.msra.mxu0 %v2388
  %2779 = vmatprep.subr.bf16.mxu0 %v2393
  %2780 = vmatpush1.bf16.msra.mxu0 %v2392
  %2781 = vmatprep.subr.bf16.mxu0 %v2397
  %2782 = vmatpush1.bf16.msra.mxu0 %v2396
  %2783 = vmatprep.subr.bf16.mxu0 %v2401
  %2784 = vmatpush1.bf16.msra.mxu0 %v2400
  %2785 = vmatprep.subr.bf16.mxu0 %v2405
  %2786 = vmatpush1.bf16.msra.mxu0 %v2404
  %2787 = vmatprep.subr.bf16.mxu0 %v2409
  %2788 = vmatpush1.bf16.msra.mxu0 %v2408
  %2789 = vmatprep.subr.bf16.mxu0 %v2413
  %2790 = vmatpush1.bf16.msra.mxu0 %v2412
  %2791 = vmatprep.subr.bf16.mxu0 %v2417
  %2792 = vmatpush1.bf16.msra.mxu0 %v2416
  %2793 = vmatprep.subr.bf16.mxu0 %v2421
  %2794 = vmatpush1.bf16.msra.mxu0 %v2420
  %2795 = vmatprep.subr.bf16.mxu0 %v2425
  %2796 = vmatpush1.bf16.msra.mxu0 %v2424
  %2797 = vmatprep.subr.bf16.mxu0 %v2429
  %2798 = vmatpush1.bf16.msra.mxu0 %v2428
  %2799 = vmatprep.subr.bf16.mxu0 %v2433
  %2800 = vmatpush1.bf16.msra.mxu0 %v2432
  %2801 = vmatprep.subr.bf16.mxu0 %v2437
  %2802 = vmatpush1.bf16.msra.mxu0 %v2436
  %2803 = vmatprep.subr.bf16.mxu0 %v2441
  %2804 = vmatpush1.bf16.msra.mxu0 %v2440
  %2805 = vmatprep.subr.bf16.mxu0 %v2445
  %2806 = vmatpush1.bf16.msra.mxu0 %v2444
  %2807 = vmatprep.subr.bf16.mxu0 %v2449
  %2808 = vmatpush1.bf16.msra.mxu0 %v2448
  %2809 = vmatprep.mubr.bf16.mxu0 %v1722
  %2810 = vmatmul.mubr.bf16.gmra.mrb[0].mxu0 %v1721
  %v2811 = vpop.f32.mrb[0].mxu0
  %v2812 = vadd.f32 %v2771, %v2811
  %v2813 = vpop.f32.mrb[0].mxu0
  %v2814 = vadd.f32 %v2773, %v2813
  %v2815 = vpop.f32.mrb[0].mxu0
  %v2816 = vpop.f32.mrb[0].mxu0
  %2817 = vdwg.mxu0
  %2818 = vmatprep.subr.bf16.mxu0 %v2453
  %2819 = vmatpush1.bf16.msra.mxu0 %v2452
  %2820 = vmatprep.subr.bf16.mxu0 %v2457
  %2821 = vmatpush1.bf16.msra.mxu0 %v2456
  %2822 = vmatprep.subr.bf16.mxu0 %v2461
  %2823 = vmatpush1.bf16.msra.mxu0 %v2460
  %2824 = vmatprep.subr.bf16.mxu0 %v2465
  %2825 = vmatpush1.bf16.msra.mxu0 %v2464
  %2826 = vmatprep.subr.bf16.mxu0 0
  %2827 = vmatpush1.bf16.msra.mxu0 0
  %2828 = vmatprep.subr.bf16.mxu0 0
  %2829 = vmatpush1.bf16.msra.mxu0 0
  %2830 = vmatprep.subr.bf16.mxu0 0
  %2831 = vmatpush1.bf16.msra.mxu0 0
  %2832 = vmatprep.subr.bf16.mxu0 0
  %2833 = vmatpush1.bf16.msra.mxu0 0
  %2834 = vmatprep.subr.bf16.mxu0 0
  %2835 = vmatpush1.bf16.msra.mxu0 0
  %2836 = vmatprep.subr.bf16.mxu0 0
  %2837 = vmatpush1.bf16.msra.mxu0 0
  %2838 = vmatprep.subr.bf16.mxu0 0
  %2839 = vmatpush1.bf16.msra.mxu0 0
  %2840 = vmatprep.subr.bf16.mxu0 0
  %2841 = vmatpush1.bf16.msra.mxu0 0
  %2842 = vmatprep.subr.bf16.mxu0 0
  %2843 = vmatpush1.bf16.msra.mxu0 0
  %2844 = vmatprep.subr.bf16.mxu0 0
  %2845 = vmatpush1.bf16.msra.mxu0 0
  %2846 = vmatprep.subr.bf16.mxu0 0
  %2847 = vmatpush1.bf16.msra.mxu0 0
  %2848 = vmatprep.subr.bf16.mxu0 0
  %2849 = vmatpush1.bf16.msra.mxu0 0
  %2850 = vmatprep.mubr.bf16.mxu0 0
  %2851 = vmatmul.mubr.bf16.gmra.mrb[0].mxu0 %v2611
  %v2852 = vpop.f32.mrb[0].mxu0
  %v2853 = vadd.f32 %v2812, %v2852
  %v2854 = vpop.f32.mrb[0].mxu0
  %v2855 = vadd.f32 %v2814, %v2854
  %v2856 = vpop.f32.mrb[0].mxu0
  %v2857 = vpop.f32.mrb[0].mxu0
  %2858 = vdwg.mxu0
  %v2859 = vmax.f32 %v2730, 0.0
  %v2860 = vmax.f32 %v2732, 0.0
  %v2861 = vmax.f32 %v2853, 0.0
  %v2862 = vmax.f32 %v2855, 0.0
  %v2863 = vpack.c.bf16 %v2859, %v2859
  %v2864 = vpack.c.bf16 %v2860, %v2860
  %v2865 = vpack.c.bf16 %v2861, %v2861
  %v2866 = vpack.c.bf16 %v2862, %v2862
  %v2867 = vld [vmem:[%s7] sm:$0xf]
  %v2868 = vld [vmem:[%s7 + $0x4] sm:$0xf]
  %v2869 = vld [vmem:[%s7 + $0x8] sm:$0xf]
  %v2870 = vld [vmem:[%s7 + $0xc] sm:$0xf]
  %v2871 = vld [vmem:[%s7 + $0x10] sm:$0xf]
  %v2872 = vld [vmem:[%s7 + $0x14] sm:$0xf]
  %v2873 = vld [vmem:[%s7 + $0x18] sm:$0xf]
  %v2874 = vld [vmem:[%s7 + $0x1c] sm:$0xf]
  %v2875 = vld [vmem:[%s7 + $0x20] sm:$0xf]
  %v2876 = vld [vmem:[%s7 + $0x24] sm:$0xf]
  %v2877 = vld [vmem:[%s7 + $0x28] sm:$0xf]
  %v2878 = vld [vmem:[%s7 + $0x2c] sm:$0xf]
  %v2879 = vld [vmem:[%s7 + $0x30] sm:$0xf]
  %v2880 = vld [vmem:[%s7 + $0x34] sm:$0xf]
  %v2881 = vld [vmem:[%s7 + $0x38] sm:$0xf]
  %v2882 = vld [vmem:[%s7 + $0x3c] sm:$0xf]
  %v2883 = vld [vmem:[%s7 + $0x40] sm:$0xf]
  %v2884 = vld [vmem:[%s7 + $0x44] sm:$0xf]
  %v2885 = vld [vmem:[%s7 + $0x48] sm:$0xf]
  %v2886 = vld [vmem:[%s7 + $0x4c] sm:$0xf]
  %v2887 = vld [vmem:[%s7 + $0x50] sm:$0xf]
  %v2888 = vld [vmem:[%s7 + $0x54] sm:$0xf]
  %v2889 = vld [vmem:[%s7 + $0x58] sm:$0xf]
  %v2890 = vld [vmem:[%s7 + $0x5c] sm:$0xf]
  %v2891 = vld [vmem:[%s7 + $0x60] sm:$0xf]
  %v2892 = vld [vmem:[%s7 + $0x64] sm:$0xf]
  %v2893 = vld [vmem:[%s7 + $0x68] sm:$0xf]
  %v2894 = vld [vmem:[%s7 + $0x6c] sm:$0xf]
  %v2895 = vld [vmem:[%s7 + $0x70] sm:$0xf]
  %v2896 = vld [vmem:[%s7 + $0x74] sm:$0xf]
  %v2897 = vld [vmem:[%s7 + $0x78] sm:$0xf]
  %v2898 = vld [vmem:[%s7 + $0x7c] sm:$0xf]
  %v2899 = vld [vmem:[%s7 + $0x80] sm:$0xf]
  %v2900 = vld [vmem:[%s7 + $0x84] sm:$0xf]
  %v2901 = vld [vmem:[%s7 + $0x88] sm:$0xf]
  %v2902 = vld [vmem:[%s7 + $0x8c] sm:$0xf]
  %v2903 = vld [vmem:[%s7 + $0x90] sm:$0xf]
  %v2904 = vld [vmem:[%s7 + $0x94] sm:$0xf]
  %v2905 = vld [vmem:[%s7 + $0x98] sm:$0xf]
  %v2906 = vld [vmem:[%s7 + $0x9c] sm:$0xf]
  %v2907 = vld [vmem:[%s7 + $0xa0] sm:$0xf]
  %v2908 = vld [vmem:[%s7 + $0xa4] sm:$0xf]
  %v2909 = vld [vmem:[%s7 + $0xa8] sm:$0xf]
  %v2910 = vld [vmem:[%s7 + $0xac] sm:$0xf]
  %v2911 = vld [vmem:[%s7 + $0xb0] sm:$0xf]
  %v2912 = vld [vmem:[%s7 + $0xb4] sm:$0xf]
  %v2913 = vld [vmem:[%s7 + $0xb8] sm:$0xf]
  %v2914 = vld [vmem:[%s7 + $0xbc] sm:$0xf]
  %v2915 = vld [vmem:[%s7 + $0xc0] sm:$0xf]
  %v2916 = vld [vmem:[%s7 + $0xc4] sm:$0xf]
  %v2917 = vld [vmem:[%s7 + $0xc8] sm:$0xf]
  %v2918 = vld [vmem:[%s7 + $0xcc] sm:$0xf]
  %v2919 = vld [vmem:[%s7 + $0xd0] sm:$0xf]
  %v2920 = vld [vmem:[%s7 + $0xd4] sm:$0xf]
  %v2921 = vld [vmem:[%s7 + $0xd8] sm:$0xf]
  %v2922 = vld [vmem:[%s7 + $0xdc] sm:$0xf]
  %v2923 = vld [vmem:[%s7 + $0xe0] sm:$0xf]
  %v2924 = vld [vmem:[%s7 + $0xe4] sm:$0xf]
  %v2925 = vld [vmem:[%s7 + $0xe8] sm:$0xf]
  %v2926 = vld [vmem:[%s7 + $0xec] sm:$0xf]
  %v2927 = vld [vmem:[%s7 + $0xf0] sm:$0xf]
  %v2928 = vld [vmem:[%s7 + $0xf4] sm:$0xf]
  %v2929 = vld [vmem:[%s7 + $0xf8] sm:$0xf]
  %v2930 = vld [vmem:[%s7 + $0xfc] sm:$0xf]
  %v2931 = vld [vmem:[%s8] sm:$0x1]
  %v2933 = vlaneseq
  %v2934 = vshrl.u32 %v2933, 7
  %v2935 = vsub.s32 0, %v2934
  %v2936 = vrot.slane %v2931, %v2935
  %v3002 = vunpack.c.l.b16 %v2867
  %v3003 = vunpack.c.l.b16 %v2868
  %v3004 = vunpack.c.l.b16 %v2869
  %v3005 = vunpack.c.l.b16 %v2870
  %v3006 = vunpack.c.l.b16 %v2871
  %v3007 = vunpack.c.l.b16 %v2872
  %v3008 = vunpack.c.l.b16 %v2873
  %v3009 = vunpack.c.l.b16 %v2874
  %v3010 = vunpack.c.l.b16 %v2875
  %v3011 = vunpack.c.l.b16 %v2876
  %v3012 = vunpack.c.l.b16 %v2877
  %v3013 = vunpack.c.l.b16 %v2878
  %v3014 = vunpack.c.l.b16 %v2879
  %v3015 = vunpack.c.l.b16 %v2880
  %v3016 = vunpack.c.l.b16 %v2881
  %v3017 = vunpack.c.l.b16 %v2882
  %v3018 = vunpack.c.l.b16 %v2883
  %v3019 = vunpack.c.l.b16 %v2884
  %v3020 = vunpack.c.l.b16 %v2885
  %v3021 = vunpack.c.l.b16 %v2886
  %v3022 = vunpack.c.l.b16 %v2887
  %v3023 = vunpack.c.l.b16 %v2888
  %v3024 = vunpack.c.l.b16 %v2889
  %v3025 = vunpack.c.l.b16 %v2890
  %v3026 = vunpack.c.l.b16 %v2891
  %v3027 = vunpack.c.l.b16 %v2892
  %v3028 = vunpack.c.l.b16 %v2893
  %v3029 = vunpack.c.l.b16 %v2894
  %v3030 = vunpack.c.l.b16 %v2895
  %v3031 = vunpack.c.l.b16 %v2896
  %v3032 = vunpack.c.l.b16 %v2897
  %v3033 = vunpack.c.l.b16 %v2898
  %v3034 = vunpack.c.l.b16 %v2899
  %v3035 = vunpack.c.l.b16 %v2900
  %v3036 = vunpack.c.l.b16 %v2901
  %v3037 = vunpack.c.l.b16 %v2902
  %v3038 = vunpack.c.l.b16 %v2903
  %v3039 = vunpack.c.l.b16 %v2904
  %v3040 = vunpack.c.l.b16 %v2905
  %v3041 = vunpack.c.l.b16 %v2906
  %v3042 = vunpack.c.l.b16 %v2907
  %v3043 = vunpack.c.l.b16 %v2908
  %v3044 = vunpack.c.l.b16 %v2909
  %v3045 = vunpack.c.l.b16 %v2910
  %v3046 = vunpack.c.l.b16 %v2911
  %v3047 = vunpack.c.l.b16 %v2912
  %v3048 = vunpack.c.l.b16 %v2913
  %v3049 = vunpack.c.l.b16 %v2914
  %v3050 = vunpack.c.l.b16 %v2915
  %v3051 = vunpack.c.l.b16 %v2916
  %v3052 = vunpack.c.l.b16 %v2917
  %v3053 = vunpack.c.l.b16 %v2918
  %v3054 = vunpack.c.l.b16 %v2919
  %v3055 = vunpack.c.l.b16 %v2920
  %v3056 = vunpack.c.l.b16 %v2921
  %v3057 = vunpack.c.l.b16 %v2922
  %v3058 = vunpack.c.l.b16 %v2923
  %v3059 = vunpack.c.l.b16 %v2924
  %v3060 = vunpack.c.l.b16 %v2925
  %v3061 = vunpack.c.l.b16 %v2926
  %v3062 = vunpack.c.l.b16 %v2927
  %v3063 = vunpack.c.l.b16 %v2928
  %v3064 = vunpack.c.l.b16 %v2929
  %v3065 = vunpack.c.l.b16 %v2930
  %v3066 = vpack.c.b16 %v3003, %v3002
  %v3067 = vpack.c.b16 %v3005, %v3004
  %v3068 = vpack.c.b16 %v3007, %v3006
  %v3069 = vpack.c.b16 %v3009, %v3008
  %v3070 = vpack.c.b16 %v3011, %v3010
  %v3071 = vpack.c.b16 %v3013, %v3012
  %v3072 = vpack.c.b16 %v3015, %v3014
  %v3073 = vpack.c.b16 %v3017, %v3016
  %v3074 = vpack.c.b16 %v3019, %v3018
  %v3075 = vpack.c.b16 %v3021, %v3020
  %v3076 = vpack.c.b16 %v3023, %v3022
  %v3077 = vpack.c.b16 %v3025, %v3024
  %v3078 = vpack.c.b16 %v3027, %v3026
  %v3079 = vpack.c.b16 %v3029, %v3028
  %v3080 = vpack.c.b16 %v3031, %v3030
  %v3081 = vpack.c.b16 %v3033, %v3032
  %v3082 = vpack.c.b16 %v3035, %v3034
  %v3083 = vpack.c.b16 %v3037, %v3036
  %v3084 = vpack.c.b16 %v3039, %v3038
  %v3085 = vpack.c.b16 %v3041, %v3040
  %v3086 = vpack.c.b16 %v3043, %v3042
  %v3087 = vpack.c.b16 %v3045, %v3044
  %v3088 = vpack.c.b16 %v3047, %v3046
  %v3089 = vpack.c.b16 %v3049, %v3048
  %v3090 = vpack.c.b16 %v3051, %v3050
  %v3091 = vpack.c.b16 %v3053, %v3052
  %v3092 = vpack.c.b16 %v3055, %v3054
  %v3093 = vpack.c.b16 %v3057, %v3056
  %v3094 = vpack.c.b16 %v3059, %v3058
  %v3095 = vpack.c.b16 %v3061, %v3060
  %v3096 = vpack.c.b16 %v3063, %v3062
  %v3097 = vpack.c.b16 %v3065, %v3064
  %3130 = vmatprep.subr.bf16.mxu0 0
  %3131 = vmatpush1.bf16.msra.mxu0 %v3066
  %3132 = vmatprep.subr.bf16.mxu0 0
  %3133 = vmatpush1.bf16.msra.mxu0 %v3067
  %3134 = vmatprep.subr.bf16.mxu0 0
  %3135 = vmatpush1.bf16.msra.mxu0 %v3068
  %3136 = vmatprep.subr.bf16.mxu0 0
  %3137 = vmatpush1.bf16.msra.mxu0 %v3069
  %3138 = vmatprep.subr.bf16.mxu0 0
  %3139 = vmatpush1.bf16.msra.mxu0 %v3070
  %3140 = vmatprep.subr.bf16.mxu0 0
  %3141 = vmatpush1.bf16.msra.mxu0 %v3071
  %3142 = vmatprep.subr.bf16.mxu0 0
  %3143 = vmatpush1.bf16.msra.mxu0 %v3072
  %3144 = vmatprep.subr.bf16.mxu0 0
  %3145 = vmatpush1.bf16.msra.mxu0 %v3073
  %3146 = vmatprep.subr.bf16.mxu0 0
  %3147 = vmatpush1.bf16.msra.mxu0 %v3074
  %3148 = vmatprep.subr.bf16.mxu0 0
  %3149 = vmatpush1.bf16.msra.mxu0 %v3075
  %3150 = vmatprep.subr.bf16.mxu0 0
  %3151 = vmatpush1.bf16.msra.mxu0 %v3076
  %3152 = vmatprep.subr.bf16.mxu0 0
  %3153 = vmatpush1.bf16.msra.mxu0 %v3077
  %3154 = vmatprep.subr.bf16.mxu0 0
  %3155 = vmatpush1.bf16.msra.mxu0 %v3078
  %3156 = vmatprep.subr.bf16.mxu0 0
  %3157 = vmatpush1.bf16.msra.mxu0 %v3079
  %3158 = vmatprep.subr.bf16.mxu0 0
  %3159 = vmatpush1.bf16.msra.mxu0 %v3080
  %3160 = vmatprep.subr.bf16.mxu0 0
  %3161 = vmatpush1.bf16.msra.mxu0 %v3081
  %3162 = vmatprep.mubr.bf16.mxu0 %v2864
  %3163 = vmatmul.mubr.bf16.gmra.mrb[0].mxu0 %v2863
  %v3164 = vpop.f32.mrb[0].mxu0
  %v3165 = vadd.f32 %v2936, %v3164
  %v3166 = vpop.f32.mrb[0].mxu0
  %v3167 = vpop.f32.mrb[0].mxu0
  %v3168 = vpop.f32.mrb[0].mxu0
  %3169 = vdwg.mxu0
  %3170 = vmatprep.subr.bf16.mxu0 0
  %3171 = vmatpush1.bf16.msra.mxu0 %v3082
  %3172 = vmatprep.subr.bf16.mxu0 0
  %3173 = vmatpush1.bf16.msra.mxu0 %v3083
  %3174 = vmatprep.subr.bf16.mxu0 0
  %3175 = vmatpush1.bf16.msra.mxu0 %v3084
  %3176 = vmatprep.subr.bf16.mxu0 0
  %3177 = vmatpush1.bf16.msra.mxu0 %v3085
  %3178 = vmatprep.subr.bf16.mxu0 0
  %3179 = vmatpush1.bf16.msra.mxu0 %v3086
  %3180 = vmatprep.subr.bf16.mxu0 0
  %3181 = vmatpush1.bf16.msra.mxu0 %v3087
  %3182 = vmatprep.subr.bf16.mxu0 0
  %3183 = vmatpush1.bf16.msra.mxu0 %v3088
  %3184 = vmatprep.subr.bf16.mxu0 0
  %3185 = vmatpush1.bf16.msra.mxu0 %v3089
  %3186 = vmatprep.subr.bf16.mxu0 0
  %3187 = vmatpush1.bf16.msra.mxu0 %v3090
  %3188 = vmatprep.subr.bf16.mxu0 0
  %3189 = vmatpush1.bf16.msra.mxu0 %v3091
  %3190 = vmatprep.subr.bf16.mxu0 0
  %3191 = vmatpush1.bf16.msra.mxu0 %v3092
  %3192 = vmatprep.subr.bf16.mxu0 0
  %3193 = vmatpush1.bf16.msra.mxu0 %v3093
  %3194 = vmatprep.subr.bf16.mxu0 0
  %3195 = vmatpush1.bf16.msra.mxu0 %v3094
  %3196 = vmatprep.subr.bf16.mxu0 0
  %3197 = vmatpush1.bf16.msra.mxu0 %v3095
  %3198 = vmatprep.subr.bf16.mxu0 0
  %3199 = vmatpush1.bf16.msra.mxu0 %v3096
  %3200 = vmatprep.subr.bf16.mxu0 0
  %3201 = vmatpush1.bf16.msra.mxu0 %v3097
  %3202 = vmatprep.mubr.bf16.mxu0 %v2866
  %3203 = vmatmul.mubr.bf16.gmra.mrb[0].mxu0 %v2865
  %v3204 = vpop.f32.mrb[0].mxu0
  %v3205 = vadd.f32 %v3165, %v3204
  %v3206 = vpop.f32.mrb[0].mxu0
  %v3207 = vpop.f32.mrb[0].mxu0
  %v3208 = vpop.f32.mrb[0].mxu0
  %3209 = vdwg.mxu0
  %3210 = vst [vmem:[%s9] sm:$0xff] %v3205
  // Predicated region
  $region38: #{net_forward.1} parent=0 // pred_check
    _
  $region39: #{net_forward.1} parent=0 // pred_check_branch
    %3212 = sbr.rel (0) target = $region41
  $region40: #{net_forward.1} parent=0 // pred_region
    _
  $region41: #{net_forward.1} parent=0 // pred_fallthru
    _
  // Predicated region
  $region42: #{net_forward.1} parent=0 // pred_check
    _
  $region43: #{net_forward.1} parent=0 // pred_check_branch
    %3214 = sbr.rel (0) target = $region45
  $region44: #{net_forward.1} parent=0 // pred_region
    _
  $region45: #{net_forward.1} parent=0 // pred_fallthru
    _

</llo_original>
